<compile_context>
chip_gen: v7x
topology: tpu7x:2x2x1
jax: 0.10.0
libtpu: 0.0.40
codegen_flags: <defaults>
</compile_context>

<pallas_src>
import functools
import math

import jax
import jax.numpy as jnp
from jax import lax
from jax.experimental import pallas as pl
from jax.experimental.pallas import tpu as pltpu


def _softplus(x):
    # cutoff at 20 differs from jax.nn.softplus by ~1e-9; documented, harmless
    return jnp.where(x > 20.0, x, jnp.log1p(jnp.exp(jnp.minimum(x, 20.0))))


def _silu(x):
    return x * jax.nn.sigmoid(x)


def _mamba_kernel(hs_ref, w_in_t_ref, conv_wx_ref, conv_bx_ref, conv_wz_ref,
                  conv_bz_ref, w_xbc_t_ref, b_dt2_ref, a_vec_ref, d_ref,
                  w_out_y_ref, w_out_z_ref, e_ref, k_ref, s_ref,
                  out_ref,
                  z_s, dA_s, dBu_s, h_s,
                  *, seqlen):
    rows = hs_ref.shape[0]                 # block_batch * seqlen
    rows_pad = dA_s.shape[0]               # rows rounded up to a multiple of 8
    Dh = d_ref.shape[1]                    # d_inner // 2
    NDh = a_vec_ref.shape[1]               # d_state * Dh (state lane = n*Dh + d)
    N = NDh // Dh
    f32, bf16 = jnp.float32, jnp.bfloat16

    # Timestep-position masks over the flattened row axis; the depthwise conv
    # must not leak across batch boundaries (reproduces padding=1 at l=0/L-1).
    row_l = lax.broadcasted_iota(jnp.int32, (rows, Dh), 0) % seqlen
    is_first = row_l == 0
    is_last = row_l == (seqlen - 1)

    def dwconv_silu(v, w, b):
        # depthwise conv1d, kernel=3, padding=1, along the (sublane) time axis
        zero = jnp.zeros((1, Dh), f32)
        v_prev = jnp.where(is_first, 0.0,
                           jnp.concatenate([zero, v[:-1, :]], axis=0))
        v_next = jnp.where(is_last, 0.0,
                           jnp.concatenate([v[1:, :], zero], axis=0))
        o = v_prev * w[0:1, :] + v * w[1:2, :] + v_next * w[2:3, :] + b
        return _silu(o)

    # ----------------- dense precompute (MXU + full-tile VPU/EUP) -----------
    xz = jnp.dot(hs_ref[...], w_in_t_ref[...],
                 preferred_element_type=f32)                   # (rows, 2*Dh)
    z_s[...] = xz[:, Dh:]                  # raw z staged; its conv runs post-scan
    x = dwconv_silu(xz[:, :Dh], conv_wx_ref[...], conv_bx_ref[...])

    # x_proj and dt_proj folded into ONE bf16 matmul -> [delta_pre | B | C]
    x_dbc = jnp.dot(x.astype(bf16), w_xbc_t_ref[...],
                    preferred_element_type=f32)                # (rows, Dh+2N)
    delta_pre = x_dbc[:, :Dh]
    Bmat = x_dbc[:, Dh:Dh + N]
    Cmat = x_dbc[:, Dh + N:Dh + 2 * N]

    # dt_proj.bias is applied twice on purpose (module quirk: dt_proj adds its
    # bias AND selective_scan_fn gets delta_bias=dt_proj.bias); b_dt2 = 2*bias.
    delta = _softplus(delta_pre + b_dt2_ref[...])              # (rows, Dh)

    # Expand into the (rows, N*Dh) state layout with constant 0/1 matmuls (MXU
    # slot, no lane concats).  a_vec = -exp(A_log) is precomputed host-side.
    e = e_ref[...]
    delta_t = jnp.dot(delta, e, preferred_element_type=f32)        # delta[d] -> n*Dh+d
    du_t = jnp.dot(delta * x, e, preferred_element_type=f32)
    b_rep = jnp.dot(Bmat, k_ref[...], preferred_element_type=f32)  # B[n] -> n*Dh+d
    c_rep = jnp.dot(Cmat, k_ref[...], preferred_element_type=f32)

    # Segmented-scan coefficients: zeroing dA at each batch's first timestep
    # cuts the recurrence at batch boundaries, so one flat scan handles all
    # block_batch sequences without any reorder copy.
    first_row = (lax.broadcasted_iota(jnp.int32, (rows, 1), 0) % seqlen) == 0
    dA_val = jnp.where(first_row, 0.0, jnp.exp(delta_t * a_vec_ref[...]))
    dBu_val = du_t * b_rep
    if rows_pad == rows:
        dA_s[...] = dA_val
        dBu_s[...] = dBu_val
    else:
        tail = rows_pad - rows
        dA_s[pl.ds(0, rows), :] = dA_val
        dBu_s[pl.ds(0, rows), :] = dBu_val
        dA_s[pl.ds(rows, tail), :] = jnp.zeros((tail, NDh), f32)
        dBu_s[pl.ds(rows, tail), :] = jnp.zeros((tail, NDh), f32)

    # ------- selective scan: chunked (8-row) Hillis-Steele prefix scan ------
    # h[t] = a[t]*h[t-1] + u[t]; per 8-sublane chunk: 3 log-steps of
    # (a2,u2)∘(a1,u1) = (a1*a2, a2*u1+u2) on full (8, NDh) tiles via sublane
    # pltpu.roll, then a single carry FMA.
    sub = lax.broadcasted_iota(jnp.int32, (8, 1), 0)

    def chunk_step(c, carry):
        base = pl.multiple_of(c * 8, 8)
        a = dA_s[pl.ds(base, 8), :]
        u = dBu_s[pl.ds(base, 8), :]
        for s in (1, 2, 4):                # unrolled for LLO visibility
            a_sh = jnp.where(sub < s, 1.0, pltpu.roll(a, s, axis=0))
            u_sh = jnp.where(sub < s, 0.0, pltpu.roll(u, s, axis=0))
            u = a * u_sh + u
            a = a * a_sh
        h = a * carry + u                  # (1, NDh) carry broadcasts over sublanes
        h_s[pl.ds(base, 8), :] = h
        return h[7:8, :]

    lax.fori_loop(0, rows_pad // 8, chunk_step, jnp.zeros((1, NDh), f32))

    # --------------- contract states with C, skip, out_proj -----------------
    h = h_s[...] if rows_pad == rows else h_s[pl.ds(0, rows), :]
    y = jnp.dot((h * c_rep).astype(bf16), s_ref[...],
                preferred_element_type=f32)                    # sum over n -> (rows, Dh)
    y = y + d_ref[...] * x                                     # D * u skip

    z = dwconv_silu(z_s[...], conv_wz_ref[...], conv_bz_ref[...])
    out_ref[...] = (jnp.dot(y.astype(bf16), w_out_y_ref[...],
                            preferred_element_type=f32)
                    + jnp.dot(z.astype(bf16), w_out_z_ref[...],
                              preferred_element_type=f32))


def mamba_vision_mixer(hidden_states, params, *, block_batch=None):
    """params are PyTorch-shaped module parameters (see init_params)."""
    (w_in, conv_w_x, conv_b_x, conv_w_z, conv_b_z, w_xp, w_dt, b_dt,
     a_log, d_vec, w_out) = params
    B, L, Dm = hidden_states.shape
    Dh, N = a_log.shape
    NDh = N * Dh
    R = w_dt.shape[1]
    f32, bf16 = jnp.float32, jnp.bfloat16

    if block_batch is None:
        block_batch = max(1, min(B, -(-256 // L)))       # ~256-row slabs for MXU
        if B >= 2:
            block_batch = min(block_batch, max(1, B // 2))  # grid>=2: v7x dual-TC
    block_batch = max(1, min(int(block_batch), B))
    while B % block_batch:
        block_batch -= 1
    if (B // block_batch) > 1 and (block_batch * L) % 8:
        block_batch = B                    # keep multi-block tiles (8,128)-friendly
    rows = block_batch * L
    rows_pad = -(-rows // 8) * 8
    Dm_pad = -(-Dm // 128) * 128           # lane-dense output store

    # Kernel-side operand layouts: Linear weights pre-transposed; bf16 for MXU
    # matmuls, f32 for elementwise / scan parameters.
    w_in_t = w_in.T.astype(bf16)                                 # (Dm, 2*Dh)
    # dt_proj folded into x_proj (exact): delta_pre = x @ (w_dt @ w_xp[:R]).T
    w_xbc_t = jnp.concatenate([w_dt @ w_xp[:R], w_xp[R:]],
                              axis=0).T.astype(bf16)             # (Dh, Dh+2N)
    b_dt2 = (2.0 * b_dt).reshape(1, Dh).astype(f32)              # double-bias quirk
    conv_wx = conv_w_x[:, 0, :].T.astype(f32)                    # (3, Dh) [tap, chan]
    conv_bx = conv_b_x.reshape(1, Dh).astype(f32)
    conv_wz = conv_w_z[:, 0, :].T.astype(f32)
    conv_bz = conv_b_z.reshape(1, Dh).astype(f32)
    a_vec = (-jnp.exp(a_log)).T.reshape(1, NDh).astype(f32)      # A[d,n] at n*Dh+d
    d_row = d_vec.reshape(1, Dh).astype(f32)
    pad_cols = ((0, 0), (0, Dm_pad - Dm))
    w_out_y = jnp.pad(w_out[:, :Dh].T, pad_cols).astype(bf16)    # (Dh, Dm_pad)
    w_out_z = jnp.pad(w_out[:, Dh:].T, pad_cols).astype(bf16)
    e_mat = jnp.tile(jnp.eye(Dh, dtype=f32), (1, N))             # delta[d] -> n*Dh+d
    k_mat = jnp.repeat(jnp.eye(N, dtype=f32), Dh, axis=1)        # B/C[n]  -> n*Dh+d
    s_mat = jnp.tile(jnp.eye(Dh, dtype=bf16), (N, 1))            # sum over n (0/1: exact)

    weights = [w_in_t, conv_wx, conv_bx, conv_wz, conv_bz, w_xbc_t, b_dt2,
               a_vec, d_row, w_out_y, w_out_z, e_mat, k_mat, s_mat]

    hs2 = hidden_states.reshape(B * L, Dm).astype(bf16)          # bf16 input DMA
    grid = (B // block_batch,)
    in_specs = ([pl.BlockSpec((rows, Dm), lambda i: (i, 0))]
                + [pl.BlockSpec(w.shape, lambda i: (0, 0)) for w in weights])
    out_specs = pl.BlockSpec((rows, Dm_pad), lambda i: (i, 0))

    weight_bytes = sum(int(w.size) * w.dtype.itemsize for w in weights)
    vmem_est = (4 * (3 * rows_pad * NDh + rows * Dh)        # scratch
                + 8 * 4 * rows * NDh                        # in-kernel temporaries
                + 2 * (2 * rows * Dm + 4 * rows * Dm_pad)   # double-buffered I/O
                + 2 * weight_bytes)
    vmem_limit = int(min(max(2 * vmem_est, 32 << 20), 64 << 20))

    out = pl.pallas_call(
        functools.partial(_mamba_kernel, seqlen=L),
        out_shape=jax.ShapeDtypeStruct((B * L, Dm_pad), f32),
        grid=grid,
        in_specs=in_specs,
        out_specs=out_specs,
        scratch_shapes=[
            pltpu.VMEM((rows, Dh), f32),        # raw z (conv deferred past scan)
            pltpu.VMEM((rows_pad, NDh), f32),   # dA  = exp(delta*A), segmented
            pltpu.VMEM((rows_pad, NDh), f32),   # dBu = delta*x*B
            pltpu.VMEM((rows_pad, NDh), f32),   # h states, all timesteps
        ],
        compiler_params=pltpu.CompilerParams(
            dimension_semantics=("parallel",),  # batch blocks independent
            vmem_limit_bytes=vmem_limit),
    )(hs2, *weights)
    return out[:, :Dm].reshape(B, L, Dm)


def init_params(key, d_model=32, d_state=8, d_conv=3, expand=1,
                dt_min=0.001, dt_max=0.1, dt_scale=1.0, dt_init_floor=1e-4):
    """Deterministic synthetic init mirroring the module's parameter shapes."""
    d_inner = int(expand * d_model)
    Dh = d_inner // 2
    dt_rank = math.ceil(d_model / 16)
    ks = jax.random.split(key, 9)

    def uni(k, shape, bound):
        return jax.random.uniform(k, shape, jnp.float32, -bound, bound)

    w_in = uni(ks[0], (d_inner, d_model), 1.0 / math.sqrt(d_model))       # in_proj.weight
    w_xp = uni(ks[1], (dt_rank + 2 * d_state, Dh), 1.0 / math.sqrt(Dh))   # x_proj.weight
    dt_init_std = dt_rank ** (-0.5) * dt_scale
    w_dt = uni(ks[2], (Dh, dt_rank), dt_init_std)                         # dt_proj.weight
    dt = jnp.exp(jax.random.uniform(ks[3], (Dh,), jnp.float32)
                 * (math.log(dt_max) - math.log(dt_min)) + math.log(dt_min))
    dt = jnp.maximum(dt, dt_init_floor)
    b_dt = dt + jnp.log(-jnp.expm1(-dt))                                  # dt_proj.bias
    a_log = jnp.log(jnp.broadcast_to(
        jnp.arange(1, d_state + 1, dtype=jnp.float32), (Dh, d_state)))    # A_log
    d_vec = jnp.ones((Dh,), jnp.float32)                                  # D
    cb = 1.0 / math.sqrt(1 * d_conv)
    conv_w_x = uni(ks[4], (Dh, 1, d_conv), cb)                            # conv1d_x.weight
    conv_b_x = uni(ks[5], (Dh,), cb)
    conv_w_z = uni(ks[6], (Dh, 1, d_conv), cb)                            # conv1d_z.weight
    conv_b_z = uni(ks[7], (Dh,), cb)
    w_out = uni(ks[8], (d_model, d_inner), 1.0 / math.sqrt(d_inner))      # out_proj.weight
    return (w_in, conv_w_x, conv_b_x, conv_w_z, conv_b_z, w_xp, w_dt, b_dt,
            a_log, d_vec, w_out)


def reference(hidden_states, params):
    """Pure-JAX f32 reference of the exact PyTorch forward semantics."""
    (w_in, conv_w_x, conv_b_x, conv_w_z, conv_b_z, w_xp, w_dt, b_dt,
     a_log, d_vec, w_out) = params
    Dh, N = a_log.shape
    R = w_dt.shape[1]

    xz = hidden_states @ w_in.T
    x, z = xz[..., :Dh], xz[..., Dh:]

    def dwconv_silu(v, w, b):
        zero = jnp.zeros_like(v[:, :1, :])
        v_prev = jnp.concatenate([zero, v[:, :-1, :]], axis=1)
        v_next = jnp.concatenate([v[:, 1:, :], zero], axis=1)
        o = v_prev * w[:, 0, 0] + v * w[:, 0, 1] + v_next * w[:, 0, 2] + b
        return o * jax.nn.sigmoid(o)

    x = dwconv_silu(x, conv_w_x, conv_b_x)
    z = dwconv_silu(z, conv_w_z, conv_b_z)
    x_dbl = x @ w_xp.T
    dt_low, Bm, Cm = x_dbl[..., :R], x_dbl[..., R:R + N], x_dbl[..., R + N:]
    delta = jax.nn.softplus(dt_low @ w_dt.T + b_dt + b_dt)   # bias applied twice, as in module
    A = -jnp.exp(a_log)

    def scan_one(u_b, d_b, B_b, C_b):
        def step(state, inp):
            u_l, d_l, B_l, C_l = inp
            state = jnp.exp(d_l[:, None] * A) * state + (d_l * u_l)[:, None] * B_l[None, :]
            return state, jnp.sum(state * C_l[None, :], axis=1) + d_vec * u_l
        _, ys = lax.scan(step, jnp.zeros((Dh, N), jnp.float32), (u_b, d_b, B_b, C_b))
        return ys

    y = jax.vmap(scan_one)(x, delta, Bm, Cm)
    return jnp.concatenate([y, z], axis=-1) @ w_out.T


if __name__ == "__main__":
    batch, seqlen, d_model, d_state = 2, 16, 32, 8
    key = jax.random.PRNGKey(0)
    pkey, xkey = jax.random.split(key)
    params = init_params(pkey, d_model=d_model, d_state=d_state)
    hidden_states = jax.random.normal(xkey, (batch, seqlen, d_model), jnp.float32)

    out = jax.block_until_ready(mamba_vision_mixer(hidden_states, params))
    ref = reference(hidden_states, params)

    assert out.shape == (batch, seqlen, d_model)
    assert bool(jnp.isfinite(out).all())
    max_err = float(jnp.max(jnp.abs(out - ref)))
    assert bool(jnp.allclose(out, ref, atol=2e-2, rtol=2e-2)), max_err
    print("KERNEL_OK")
</pallas_src>

<mosaic_0001>
module attributes {stable_mosaic.version = 11 : i64} {
  func.func @_mamba_kernel(%arg0: i32, %arg1: memref<16x32xbf16, #tpu.memory_space<vmem>>, %arg2: memref<32x32xbf16, #tpu.memory_space<vmem>>, %arg3: memref<3x16xf32, #tpu.memory_space<vmem>>, %arg4: memref<1x16xf32, #tpu.memory_space<vmem>>, %arg5: memref<3x16xf32, #tpu.memory_space<vmem>>, %arg6: memref<1x16xf32, #tpu.memory_space<vmem>>, %arg7: memref<16x32xbf16, #tpu.memory_space<vmem>>, %arg8: memref<1x16xf32, #tpu.memory_space<vmem>>, %arg9: memref<1x128xf32, #tpu.memory_space<vmem>>, %arg10: memref<1x16xf32, #tpu.memory_space<vmem>>, %arg11: memref<16x128xbf16, #tpu.memory_space<vmem>>, %arg12: memref<16x128xbf16, #tpu.memory_space<vmem>>, %arg13: memref<16x128xf32, #tpu.memory_space<vmem>>, %arg14: memref<8x128xf32, #tpu.memory_space<vmem>>, %arg15: memref<128x16xbf16, #tpu.memory_space<vmem>>, %arg16: memref<16x128xf32, #tpu.memory_space<vmem>>, %arg17: memref<16x16xf32, #tpu.memory_space<vmem>>, %arg18: memref<16x128xf32, #tpu.memory_space<vmem>>, %arg19: memref<16x128xf32, #tpu.memory_space<vmem>>, %arg20: memref<16x128xf32, #tpu.memory_space<vmem>>) attributes {dimension_semantics = [#tpu.dimension_semantics<parallel>], iteration_bounds = array<i64: 2>, scalar_prefetch = 0 : i64, scratch_operands = 4 : i64, tpu.core_type = #tpu.core_type<tc>, window_params = [{transform_indices = @transform_0, window_bounds = array<i64: 16, 32>}, {pipeline_mode = #tpu.pipeline_mode<synchronous>, transform_indices = @transform_1, window_bounds = array<i64: 32, 32>}, {pipeline_mode = #tpu.pipeline_mode<synchronous>, transform_indices = @transform_2, window_bounds = array<i64: 3, 16>}, {pipeline_mode = #tpu.pipeline_mode<synchronous>, transform_indices = @transform_3, window_bounds = array<i64: 1, 16>}, {pipeline_mode = #tpu.pipeline_mode<synchronous>, transform_indices = @transform_4, window_bounds = array<i64: 3, 16>}, {pipeline_mode = #tpu.pipeline_mode<synchronous>, transform_indices = @transform_5, window_bounds = array<i64: 1, 16>}, {pipeline_mode = #tpu.pipeline_mode<synchronous>, transform_indices = @transform_6, window_bounds = array<i64: 16, 32>}, {pipeline_mode = #tpu.pipeline_mode<synchronous>, transform_indices = @transform_7, window_bounds = array<i64: 1, 16>}, {pipeline_mode = #tpu.pipeline_mode<synchronous>, transform_indices = @transform_8, window_bounds = array<i64: 1, 128>}, {pipeline_mode = #tpu.pipeline_mode<synchronous>, transform_indices = @transform_9, window_bounds = array<i64: 1, 16>}, {pipeline_mode = #tpu.pipeline_mode<synchronous>, transform_indices = @transform_10, window_bounds = array<i64: 16, 128>}, {pipeline_mode = #tpu.pipeline_mode<synchronous>, transform_indices = @transform_11, window_bounds = array<i64: 16, 128>}, {pipeline_mode = #tpu.pipeline_mode<synchronous>, transform_indices = @transform_12, window_bounds = array<i64: 16, 128>}, {pipeline_mode = #tpu.pipeline_mode<synchronous>, transform_indices = @transform_13, window_bounds = array<i64: 8, 128>}, {pipeline_mode = #tpu.pipeline_mode<synchronous>, transform_indices = @transform_14, window_bounds = array<i64: 128, 16>}, {transform_indices = @transform_15, window_bounds = array<i64: 16, 128>}]} {
    %0 = tpu.iota {dimensions = array<i32: 0>} : vector<16x16xi32>
    %c16_i32 = arith.constant 16 : i32
    %c0_i32 = arith.constant 0 : i32
    %1 = arith.cmpi eq, %c16_i32, %c0_i32 : i32
    %c1_i32 = arith.constant 1 : i32
    %2 = arith.select %1, %c1_i32, %c16_i32 : i32
    %3 = vector.broadcast %2 : i32 to vector<16x16xi32>
    %4 = arith.remsi %0, %3 : vector<16x16xi32>
    %c0_i32_0 = arith.constant 0 : i32
    %5 = vector.broadcast %c0_i32_0 : i32 to vector<16x16xi32>
    %6 = arith.cmpi ne, %4, %5 : vector<16x16xi32>
    %c0_i32_1 = arith.constant 0 : i32
    %7 = vector.broadcast %c0_i32_1 : i32 to vector<16x16xi32>
    %8 = arith.cmpi slt, %4, %7 : vector<16x16xi32>
    %c0_i32_2 = arith.constant 0 : i32
    %9 = arith.cmpi slt, %2, %c0_i32_2 : i32
    %10 = vector.broadcast %9 : i1 to vector<16x16xi1>
    %11 = vector.broadcast %10 : vector<16x16xi1> to vector<16x16xi1>
    %12 = arith.xori %8, %11 : vector<16x16xi1>
    %13 = arith.andi %12, %6 : vector<16x16xi1>
    %14 = vector.broadcast %2 : i32 to vector<16x16xi32>
    %15 = arith.addi %4, %14 : vector<16x16xi32>
    %16 = arith.select %13, %15, %4 : vector<16x16xi1>, vector<16x16xi32>
    %c0_i32_3 = arith.constant 0 : i32
    %17 = vector.broadcast %c0_i32_3 : i32 to vector<16x16xi32>
    %18 = arith.cmpi eq, %16, %17 : vector<16x16xi32>
    %c15_i32 = arith.constant 15 : i32
    %19 = vector.broadcast %c15_i32 : i32 to vector<16x16xi32>
    %20 = arith.cmpi eq, %16, %19 : vector<16x16xi32>
    %c0 = arith.constant 0 : index
    %c0_4 = arith.constant 0 : index
    %21 = vector.load %arg1[%c0, %c0_4] : memref<16x32xbf16, #tpu.memory_space<vmem>>, vector<16x32xbf16>
    %c0_5 = arith.constant 0 : index
    %c0_6 = arith.constant 0 : index
    %22 = vector.load %arg2[%c0_5, %c0_6] : memref<32x32xbf16, #tpu.memory_space<vmem>>, vector<32x32xbf16>
    %cst = arith.constant dense<0.000000e+00> : vector<16x32xf32>
    %23 = tpu.matmul %21, %22, %cst {dimension_numbers = #tpu.dot_dimension_numbers<[1], [0], [0], [1], [0, 0, 1, 1], [], []>} : vector<16x32xbf16>, vector<32x32xbf16>, vector<16x32xf32> -> vector<16x32xf32>
    %24 = vector.extract_strided_slice %23 {offsets = [0, 16], sizes = [16, 16], strides = [1, 1]} : vector<16x32xf32> to vector<16x16xf32>
    %c0_7 = arith.constant 0 : index
    %c0_8 = arith.constant 0 : index
    %25 = vector.load %arg17[%c0_7, %c0_8] : memref<16x16xf32, #tpu.memory_space<vmem>>, vector<16x16xf32>
    tpu.vector_store %arg17[%c0_7, %c0_8], %24 {strides = array<i32>} : memref<16x16xf32, #tpu.memory_space<vmem>>, vector<16x16xf32>,
    %26 = vector.extract_strided_slice %23 {offsets = [0, 0], sizes = [16, 16], strides = [1, 1]} : vector<16x32xf32> to vector<16x16xf32>
    %c0_9 = arith.constant 0 : index
    %c0_10 = arith.constant 0 : index
    %27 = vector.load %arg3[%c0_9, %c0_10] : memref<3x16xf32, #tpu.memory_space<vmem>>, vector<3x16xf32>
    %c0_11 = arith.constant 0 : index
    %c0_12 = arith.constant 0 : index
    %28 = vector.load %arg4[%c0_11, %c0_12] : memref<1x16xf32, #tpu.memory_space<vmem>>, vector<1x16xf32>
    %cst_13 = arith.constant 0.000000e+00 : f32
    %29 = vector.broadcast %cst_13 : f32 to vector<1x16xf32>
    %30 = vector.extract_strided_slice %26 {offsets = [0, 0], sizes = [15, 16], strides = [1, 1]} : vector<16x16xf32> to vector<15x16xf32>
    %31 = tpu.concatenate %29, %30 in 0 : vector<1x16xf32>, vector<15x16xf32> -> vector<16x16xf32>
    %cst_14 = arith.constant 0.000000e+00 : f32
    %32 = vector.broadcast %cst_14 : f32 to vector<16x16xf32>
    %33 = arith.select %18, %32, %31 : vector<16x16xi1>, vector<16x16xf32>
    %34 = vector.extract_strided_slice %26 {offsets = [1, 0], sizes = [15, 16], strides = [1, 1]} : vector<16x16xf32> to vector<15x16xf32>
    %35 = tpu.concatenate %34, %29 in 0 : vector<15x16xf32>, vector<1x16xf32> -> vector<16x16xf32>
    %cst_15 = arith.constant 0.000000e+00 : f32
    %36 = vector.broadcast %cst_15 : f32 to vector<16x16xf32>
    %37 = arith.select %20, %36, %35 : vector<16x16xi1>, vector<16x16xf32>
    %38 = vector.extract_strided_slice %27 {offsets = [0, 0], sizes = [1, 16], strides = [1, 1]} : vector<3x16xf32> to vector<1x16xf32>
    %39 = vector.broadcast %38 : vector<1x16xf32> to vector<16x16xf32>
    %40 = arith.mulf %33, %39 : vector<16x16xf32>
    %41 = vector.extract_strided_slice %27 {offsets = [1, 0], sizes = [1, 16], strides = [1, 1]} : vector<3x16xf32> to vector<1x16xf32>
    %42 = vector.broadcast %41 : vector<1x16xf32> to vector<16x16xf32>
    %43 = arith.mulf %26, %42 : vector<16x16xf32>
    %44 = arith.addf %40, %43 : vector<16x16xf32>
    %45 = vector.extract_strided_slice %27 {offsets = [2, 0], sizes = [1, 16], strides = [1, 1]} : vector<3x16xf32> to vector<1x16xf32>
    %46 = vector.broadcast %45 : vector<1x16xf32> to vector<16x16xf32>
    %47 = arith.mulf %37, %46 : vector<16x16xf32>
    %48 = arith.addf %44, %47 : vector<16x16xf32>
    %49 = vector.broadcast %28 : vector<1x16xf32> to vector<16x16xf32>
    %50 = arith.addf %48, %49 : vector<16x16xf32>
    %51 = arith.negf %50 : vector<16x16xf32>
    %52 = math.exp %51 : vector<16x16xf32>
    %cst_16 = arith.constant 1.000000e+00 : f32
    %53 = vector.broadcast %cst_16 : f32 to vector<16x16xf32>
    %54 = arith.addf %53, %52 : vector<16x16xf32>
    %55 = arith.divf %53, %54 : vector<16x16xf32>
    %56 = arith.mulf %50, %55 : vector<16x16xf32>
    %57 = arith.truncf %56 : vector<16x16xf32> to vector<16x16xbf16>
    %c0_17 = arith.constant 0 : index
    %c0_18 = arith.constant 0 : index
    %58 = vector.load %arg7[%c0_17, %c0_18] : memref<16x32xbf16, #tpu.memory_space<vmem>>, vector<16x32xbf16>
    %cst_19 = arith.constant dense<0.000000e+00> : vector<16x32xf32>
    %59 = tpu.matmul %57, %58, %cst_19 {dimension_numbers = #tpu.dot_dimension_numbers<[1], [0], [0], [1], [0, 0, 1, 1], [], []>} : vector<16x16xbf16>, vector<16x32xbf16>, vector<16x32xf32> -> vector<16x32xf32>
    %60 = vector.extract_strided_slice %59 {offsets = [0, 0], sizes = [16, 16], strides = [1, 1]} : vector<16x32xf32> to vector<16x16xf32>
    %61 = vector.extract_strided_slice %59 {offsets = [0, 16], sizes = [16, 8], strides = [1, 1]} : vector<16x32xf32> to vector<16x8xf32>
    %62 = vector.extract_strided_slice %59 {offsets = [0, 24], sizes = [16, 8], strides = [1, 1]} : vector<16x32xf32> to vector<16x8xf32>
    %c0_20 = arith.constant 0 : index
    %c0_21 = arith.constant 0 : index
    %63 = vector.load %arg8[%c0_20, %c0_21] : memref<1x16xf32, #tpu.memory_space<vmem>>, vector<1x16xf32>
    %64 = vector.broadcast %63 : vector<1x16xf32> to vector<16x16xf32>
    %65 = arith.addf %60, %64 : vector<16x16xf32>
    %cst_22 = arith.constant 2.000000e+01 : f32
    %66 = vector.broadcast %cst_22 : f32 to vector<16x16xf32>
    %67 = arith.cmpf ogt, %65, %66 : vector<16x16xf32>
    %cst_23 = arith.constant 2.000000e+01 : f32
    %68 = vector.broadcast %cst_23 : f32 to vector<16x16xf32>
    %69 = arith.minimumf %65, %68 : vector<16x16xf32>
    %70 = math.exp %69 : vector<16x16xf32>
    %71 = math.log1p %70 : vector<16x16xf32>
    %72 = arith.select %67, %65, %71 : vector<16x16xi1>, vector<16x16xf32>
    %c0_24 = arith.constant 0 : index
    %c0_25 = arith.constant 0 : index
    %73 = vector.load %arg13[%c0_24, %c0_25] : memref<16x128xf32, #tpu.memory_space<vmem>>, vector<16x128xf32>
    %cst_26 = arith.constant dense<0.000000e+00> : vector<16x128xf32>
    %74 = tpu.matmul %72, %73, %cst_26 {dimension_numbers = #tpu.dot_dimension_numbers<[1], [0], [0], [1], [0, 0, 1, 1], [], []>} : vector<16x16xf32>, vector<16x128xf32>, vector<16x128xf32> -> vector<16x128xf32>
    %75 = arith.mulf %72, %56 : vector<16x16xf32>
    %cst_27 = arith.constant dense<0.000000e+00> : vector<16x128xf32>
    %76 = tpu.matmul %75, %73, %cst_27 {dimension_numbers = #tpu.dot_dimension_numbers<[1], [0], [0], [1], [0, 0, 1, 1], [], []>} : vector<16x16xf32>, vector<16x128xf32>, vector<16x128xf32> -> vector<16x128xf32>
    %c0_28 = arith.constant 0 : index
    %c0_29 = arith.constant 0 : index
    %77 = vector.load %arg14[%c0_28, %c0_29] : memref<8x128xf32, #tpu.memory_space<vmem>>, vector<8x128xf32>
    %cst_30 = arith.constant dense<0.000000e+00> : vector<16x128xf32>
    %78 = tpu.matmul %61, %77, %cst_30 {dimension_numbers = #tpu.dot_dimension_numbers<[1], [0], [0], [1], [0, 0, 1, 1], [], []>} : vector<16x8xf32>, vector<8x128xf32>, vector<16x128xf32> -> vector<16x128xf32>
    %c0_31 = arith.constant 0 : index
    %c0_32 = arith.constant 0 : index
    %79 = vector.load %arg14[%c0_31, %c0_32] : memref<8x128xf32, #tpu.memory_space<vmem>>, vector<8x128xf32>
    %cst_33 = arith.constant dense<0.000000e+00> : vector<16x128xf32>
    %80 = tpu.matmul %62, %79, %cst_33 {dimension_numbers = #tpu.dot_dimension_numbers<[1], [0], [0], [1], [0, 0, 1, 1], [], []>} : vector<16x8xf32>, vector<8x128xf32>, vector<16x128xf32> -> vector<16x128xf32>
    %81 = tpu.iota {dimensions = array<i32: 0>} : vector<16x1xi32>
    %c16_i32_34 = arith.constant 16 : i32
    %c0_i32_35 = arith.constant 0 : i32
    %82 = arith.cmpi eq, %c16_i32_34, %c0_i32_35 : i32
    %c1_i32_36 = arith.constant 1 : i32
    %83 = arith.select %82, %c1_i32_36, %c16_i32_34 : i32
    %84 = vector.broadcast %83 : i32 to vector<16x1xi32>
    %85 = arith.remsi %81, %84 : vector<16x1xi32>
    %c0_i32_37 = arith.constant 0 : i32
    %86 = vector.broadcast %c0_i32_37 : i32 to vector<16x1xi32>
    %87 = arith.cmpi ne, %85, %86 : vector<16x1xi32>
    %c0_i32_38 = arith.constant 0 : i32
    %88 = vector.broadcast %c0_i32_38 : i32 to vector<16x1xi32>
    %89 = arith.cmpi slt, %85, %88 : vector<16x1xi32>
    %c0_i32_39 = arith.constant 0 : i32
    %90 = arith.cmpi slt, %83, %c0_i32_39 : i32
    %91 = vector.broadcast %90 : i1 to vector<16x1xi1>
    %92 = vector.broadcast %91 : vector<16x1xi1> to vector<16x1xi1>
    %93 = arith.xori %89, %92 : vector<16x1xi1>
    %94 = arith.andi %93, %87 : vector<16x1xi1>
    %95 = vector.broadcast %83 : i32 to vector<16x1xi32>
    %96 = arith.addi %85, %95 : vector<16x1xi32>
    %97 = arith.select %94, %96, %85 : vector<16x1xi1>, vector<16x1xi32>
    %c0_i32_40 = arith.constant 0 : i32
    %98 = vector.broadcast %c0_i32_40 : i32 to vector<16x1xi32>
    %99 = arith.cmpi eq, %97, %98 : vector<16x1xi32>
    %c0_41 = arith.constant 0 : index
    %c0_42 = arith.constant 0 : index
    %100 = vector.load %arg9[%c0_41, %c0_42] : memref<1x128xf32, #tpu.memory_space<vmem>>, vector<1x128xf32>
    %101 = vector.broadcast %100 : vector<1x128xf32> to vector<16x128xf32>
    %102 = arith.mulf %74, %101 : vector<16x128xf32>
    %103 = math.exp %102 : vector<16x128xf32>
    %cst_43 = arith.constant 0.000000e+00 : f32
    %104 = vector.shape_cast %99 : vector<16x1xi1> to vector<16x1xi1>
    %105 = vector.broadcast %104 : vector<16x1xi1> to vector<16x128xi1>
    %106 = vector.broadcast %cst_43 : f32 to vector<16x128xf32>
    %107 = arith.select %105, %106, %103 : vector<16x128xi1>, vector<16x128xf32>
    %108 = arith.mulf %76, %78 : vector<16x128xf32>
    %c0_44 = arith.constant 0 : index
    %c0_45 = arith.constant 0 : index
    %109 = vector.load %arg18[%c0_44, %c0_45] : memref<16x128xf32, #tpu.memory_space<vmem>>, vector<16x128xf32>
    tpu.vector_store %arg18[%c0_44, %c0_45], %107 {strides = array<i32>} : memref<16x128xf32, #tpu.memory_space<vmem>>, vector<16x128xf32>,
    %c0_46 = arith.constant 0 : index
    %c0_47 = arith.constant 0 : index
    %110 = vector.load %arg19[%c0_46, %c0_47] : memref<16x128xf32, #tpu.memory_space<vmem>>, vector<16x128xf32>
    tpu.vector_store %arg19[%c0_46, %c0_47], %108 {strides = array<i32>} : memref<16x128xf32, #tpu.memory_space<vmem>>, vector<16x128xf32>,
    %111 = tpu.iota {dimensions = array<i32: 0>} : vector<8x1xi32>
    %cst_48 = arith.constant 0.000000e+00 : f32
    %112 = vector.broadcast %cst_48 : f32 to vector<1x128xf32>
    %c0_i32_49 = arith.constant 0 : i32
    %c2_i32 = arith.constant 2 : i32
    %113 = arith.addi %c0_i32_49, %c2_i32 : i32
    %c1_i32_50 = arith.constant 1 : i32
    %114 = scf.for %arg21 = %c0_i32_49 to %113 step %c1_i32_50 iter_args(%arg22 = %112) -> (vector<1x128xf32>)  : i32 {
      %c8_i32 = arith.constant 8 : i32
      %163 = arith.muli %arg21, %c8_i32 : i32
      %164 = tpu.assume_multiple %163, 8 : i32
      %165 = arith.index_cast %164 : i32 to index
      %c0_77 = arith.constant 0 : index
      %166 = vector.load %arg18[%165, %c0_77] : memref<16x128xf32, #tpu.memory_space<vmem>>, vector<8x128xf32>
      %167 = arith.index_cast %164 : i32 to index
      %c0_78 = arith.constant 0 : index
      %168 = vector.load %arg19[%167, %c0_78] : memref<16x128xf32, #tpu.memory_space<vmem>>, vector<8x128xf32>
      %c1_i32_79 = arith.constant 1 : i32
      %169 = vector.broadcast %c1_i32_79 : i32 to vector<8x1xi32>
      %170 = arith.cmpi slt, %111, %169 : vector<8x1xi32>
      %c1_i32_80 = arith.constant 1 : i32
      %171 = tpu.dynamic_rotate %166 by %c1_i32_80 dim 0 : vector<8x128xf32>, i32 -> vector<8x128xf32>
      %cst_81 = arith.constant 1.000000e+00 : f32
      %172 = vector.shape_cast %170 : vector<8x1xi1> to vector<8x1xi1>
      %173 = vector.broadcast %172 : vector<8x1xi1> to vector<8x128xi1>
      %174 = vector.broadcast %cst_81 : f32 to vector<8x128xf32>
      %175 = arith.select %173, %174, %171 : vector<8x128xi1>, vector<8x128xf32>
      %c1_i32_82 = arith.constant 1 : i32
      %176 = vector.broadcast %c1_i32_82 : i32 to vector<8x1xi32>
      %177 = arith.cmpi slt, %111, %176 : vector<8x1xi32>
      %c1_i32_83 = arith.constant 1 : i32
      %178 = tpu.dynamic_rotate %168 by %c1_i32_83 dim 0 : vector<8x128xf32>, i32 -> vector<8x128xf32>
      %cst_84 = arith.constant 0.000000e+00 : f32
      %179 = vector.shape_cast %177 : vector<8x1xi1> to vector<8x1xi1>
      %180 = vector.broadcast %179 : vector<8x1xi1> to vector<8x128xi1>
      %181 = vector.broadcast %cst_84 : f32 to vector<8x128xf32>
      %182 = arith.select %180, %181, %178 : vector<8x128xi1>, vector<8x128xf32>
      %183 = arith.mulf %166, %182 : vector<8x128xf32>
      %184 = arith.addf %183, %168 : vector<8x128xf32>
      %185 = arith.mulf %166, %175 : vector<8x128xf32>
      %c2_i32_85 = arith.constant 2 : i32
      %186 = vector.broadcast %c2_i32_85 : i32 to vector<8x1xi32>
      %187 = arith.cmpi slt, %111, %186 : vector<8x1xi32>
      %c2_i32_86 = arith.constant 2 : i32
      %188 = tpu.dynamic_rotate %185 by %c2_i32_86 dim 0 : vector<8x128xf32>, i32 -> vector<8x128xf32>
      %cst_87 = arith.constant 1.000000e+00 : f32
      %189 = vector.shape_cast %187 : vector<8x1xi1> to vector<8x1xi1>
      %190 = vector.broadcast %189 : vector<8x1xi1> to vector<8x128xi1>
      %191 = vector.broadcast %cst_87 : f32 to vector<8x128xf32>
      %192 = arith.select %190, %191, %188 : vector<8x128xi1>, vector<8x128xf32>
      %c2_i32_88 = arith.constant 2 : i32
      %193 = vector.broadcast %c2_i32_88 : i32 to vector<8x1xi32>
      %194 = arith.cmpi slt, %111, %193 : vector<8x1xi32>
      %c2_i32_89 = arith.constant 2 : i32
      %195 = tpu.dynamic_rotate %184 by %c2_i32_89 dim 0 : vector<8x128xf32>, i32 -> vector<8x128xf32>
      %cst_90 = arith.constant 0.000000e+00 : f32
      %196 = vector.shape_cast %194 : vector<8x1xi1> to vector<8x1xi1>
      %197 = vector.broadcast %196 : vector<8x1xi1> to vector<8x128xi1>
      %198 = vector.broadcast %cst_90 : f32 to vector<8x128xf32>
      %199 = arith.select %197, %198, %195 : vector<8x128xi1>, vector<8x128xf32>
      %200 = arith.mulf %185, %199 : vector<8x128xf32>
      %201 = arith.addf %200, %184 : vector<8x128xf32>
      %202 = arith.mulf %185, %192 : vector<8x128xf32>
      %c4_i32 = arith.constant 4 : i32
      %203 = vector.broadcast %c4_i32 : i32 to vector<8x1xi32>
      %204 = arith.cmpi slt, %111, %203 : vector<8x1xi32>
      %c4_i32_91 = arith.constant 4 : i32
      %205 = tpu.dynamic_rotate %202 by %c4_i32_91 dim 0 : vector<8x128xf32>, i32 -> vector<8x128xf32>
      %cst_92 = arith.constant 1.000000e+00 : f32
      %206 = vector.shape_cast %204 : vector<8x1xi1> to vector<8x1xi1>
      %207 = vector.broadcast %206 : vector<8x1xi1> to vector<8x128xi1>
      %208 = vector.broadcast %cst_92 : f32 to vector<8x128xf32>
      %209 = arith.select %207, %208, %205 : vector<8x128xi1>, vector<8x128xf32>
      %c4_i32_93 = arith.constant 4 : i32
      %210 = vector.broadcast %c4_i32_93 : i32 to vector<8x1xi32>
      %211 = arith.cmpi slt, %111, %210 : vector<8x1xi32>
      %c4_i32_94 = arith.constant 4 : i32
      %212 = tpu.dynamic_rotate %201 by %c4_i32_94 dim 0 : vector<8x128xf32>, i32 -> vector<8x128xf32>
      %cst_95 = arith.constant 0.000000e+00 : f32
      %213 = vector.shape_cast %211 : vector<8x1xi1> to vector<8x1xi1>
      %214 = vector.broadcast %213 : vector<8x1xi1> to vector<8x128xi1>
      %215 = vector.broadcast %cst_95 : f32 to vector<8x128xf32>
      %216 = arith.select %214, %215, %212 : vector<8x128xi1>, vector<8x128xf32>
      %217 = arith.mulf %202, %216 : vector<8x128xf32>
      %218 = arith.addf %217, %201 : vector<8x128xf32>
      %219 = arith.mulf %202, %209 : vector<8x128xf32>
      %220 = vector.broadcast %arg22 : vector<1x128xf32> to vector<8x128xf32>
      %221 = arith.mulf %219, %220 : vector<8x128xf32>
      %222 = arith.addf %221, %218 : vector<8x128xf32>
      %223 = arith.index_cast %164 : i32 to index
      %c0_96 = arith.constant 0 : index
      %224 = vector.load %arg20[%223, %c0_96] : memref<16x128xf32, #tpu.memory_space<vmem>>, vector<8x128xf32>
      tpu.vector_store %arg20[%223, %c0_96], %222 {strides = array<i32>} : memref<16x128xf32, #tpu.memory_space<vmem>>, vector<8x128xf32>,
      %225 = vector.extract_strided_slice %222 {offsets = [7, 0], sizes = [1, 128], strides = [1, 1]} : vector<8x128xf32> to vector<1x128xf32>
      scf.yield %225 : vector<1x128xf32>
    }
    %c2_i32_51 = arith.constant 2 : i32
    %c0_52 = arith.constant 0 : index
    %c0_53 = arith.constant 0 : index
    %115 = vector.load %arg20[%c0_52, %c0_53] : memref<16x128xf32, #tpu.memory_space<vmem>>, vector<16x128xf32>
    %116 = arith.mulf %115, %80 : vector<16x128xf32>
    %117 = arith.truncf %116 : vector<16x128xf32> to vector<16x128xbf16>
    %c0_54 = arith.constant 0 : index
    %c0_55 = arith.constant 0 : index
    %118 = vector.load %arg15[%c0_54, %c0_55] : memref<128x16xbf16, #tpu.memory_space<vmem>>, vector<128x16xbf16>
    %cst_56 = arith.constant dense<0.000000e+00> : vector<16x16xf32>
    %119 = tpu.matmul %117, %118, %cst_56 {dimension_numbers = #tpu.dot_dimension_numbers<[1], [0], [0], [1], [0, 0, 1, 1], [], []>} : vector<16x128xbf16>, vector<128x16xbf16>, vector<16x16xf32> -> vector<16x16xf32>
    %c0_57 = arith.constant 0 : index
    %c0_58 = arith.constant 0 : index
    %120 = vector.load %arg10[%c0_57, %c0_58] : memref<1x16xf32, #tpu.memory_space<vmem>>, vector<1x16xf32>
    %121 = vector.broadcast %120 : vector<1x16xf32> to vector<16x16xf32>
    %122 = arith.mulf %121, %56 : vector<16x16xf32>
    %123 = arith.addf %119, %122 : vector<16x16xf32>
    %c0_59 = arith.constant 0 : index
    %c0_60 = arith.constant 0 : index
    %124 = vector.load %arg17[%c0_59, %c0_60] : memref<16x16xf32, #tpu.memory_space<vmem>>, vector<16x16xf32>
    %c0_61 = arith.constant 0 : index
    %c0_62 = arith.constant 0 : index
    %125 = vector.load %arg5[%c0_61, %c0_62] : memref<3x16xf32, #tpu.memory_space<vmem>>, vector<3x16xf32>
    %c0_63 = arith.constant 0 : index
    %c0_64 = arith.constant 0 : index
    %126 = vector.load %arg6[%c0_63, %c0_64] : memref<1x16xf32, #tpu.memory_space<vmem>>, vector<1x16xf32>
    %cst_65 = arith.constant 0.000000e+00 : f32
    %127 = vector.broadcast %cst_65 : f32 to vector<1x16xf32>
    %128 = vector.extract_strided_slice %124 {offsets = [0, 0], sizes = [15, 16], strides = [1, 1]} : vector<16x16xf32> to vector<15x16xf32>
    %129 = tpu.concatenate %127, %128 in 0 : vector<1x16xf32>, vector<15x16xf32> -> vector<16x16xf32>
    %cst_66 = arith.constant 0.000000e+00 : f32
    %130 = vector.broadcast %cst_66 : f32 to vector<16x16xf32>
    %131 = arith.select %18, %130, %129 : vector<16x16xi1>, vector<16x16xf32>
    %132 = vector.extract_strided_slice %124 {offsets = [1, 0], sizes = [15, 16], strides = [1, 1]} : vector<16x16xf32> to vector<15x16xf32>
    %133 = tpu.concatenate %132, %127 in 0 : vector<15x16xf32>, vector<1x16xf32> -> vector<16x16xf32>
    %cst_67 = arith.constant 0.000000e+00 : f32
    %134 = vector.broadcast %cst_67 : f32 to vector<16x16xf32>
    %135 = arith.select %20, %134, %133 : vector<16x16xi1>, vector<16x16xf32>
    %136 = vector.extract_strided_slice %125 {offsets = [0, 0], sizes = [1, 16], strides = [1, 1]} : vector<3x16xf32> to vector<1x16xf32>
    %137 = vector.broadcast %136 : vector<1x16xf32> to vector<16x16xf32>
    %138 = arith.mulf %131, %137 : vector<16x16xf32>
    %139 = vector.extract_strided_slice %125 {offsets = [1, 0], sizes = [1, 16], strides = [1, 1]} : vector<3x16xf32> to vector<1x16xf32>
    %140 = vector.broadcast %139 : vector<1x16xf32> to vector<16x16xf32>
    %141 = arith.mulf %124, %140 : vector<16x16xf32>
    %142 = arith.addf %138, %141 : vector<16x16xf32>
    %143 = vector.extract_strided_slice %125 {offsets = [2, 0], sizes = [1, 16], strides = [1, 1]} : vector<3x16xf32> to vector<1x16xf32>
    %144 = vector.broadcast %143 : vector<1x16xf32> to vector<16x16xf32>
    %145 = arith.mulf %135, %144 : vector<16x16xf32>
    %146 = arith.addf %142, %145 : vector<16x16xf32>
    %147 = vector.broadcast %126 : vector<1x16xf32> to vector<16x16xf32>
    %148 = arith.addf %146, %147 : vector<16x16xf32>
    %149 = arith.negf %148 : vector<16x16xf32>
    %150 = math.exp %149 : vector<16x16xf32>
    %cst_68 = arith.constant 1.000000e+00 : f32
    %151 = vector.broadcast %cst_68 : f32 to vector<16x16xf32>
    %152 = arith.addf %151, %150 : vector<16x16xf32>
    %153 = arith.divf %151, %152 : vector<16x16xf32>
    %154 = arith.mulf %148, %153 : vector<16x16xf32>
    %155 = arith.truncf %123 : vector<16x16xf32> to vector<16x16xbf16>
    %c0_69 = arith.constant 0 : index
    %c0_70 = arith.constant 0 : index
    %156 = vector.load %arg11[%c0_69, %c0_70] : memref<16x128xbf16, #tpu.memory_space<vmem>>, vector<16x128xbf16>
    %cst_71 = arith.constant dense<0.000000e+00> : vector<16x128xf32>
    %157 = tpu.matmul %155, %156, %cst_71 {dimension_numbers = #tpu.dot_dimension_numbers<[1], [0], [0], [1], [0, 0, 1, 1], [], []>} : vector<16x16xbf16>, vector<16x128xbf16>, vector<16x128xf32> -> vector<16x128xf32>
    %158 = arith.truncf %154 : vector<16x16xf32> to vector<16x16xbf16>
    %c0_72 = arith.constant 0 : index
    %c0_73 = arith.constant 0 : index
    %159 = vector.load %arg12[%c0_72, %c0_73] : memref<16x128xbf16, #tpu.memory_space<vmem>>, vector<16x128xbf16>
    %cst_74 = arith.constant dense<0.000000e+00> : vector<16x128xf32>
    %160 = tpu.matmul %158, %159, %cst_74 {dimension_numbers = #tpu.dot_dimension_numbers<[1], [0], [0], [1], [0, 0, 1, 1], [], []>} : vector<16x16xbf16>, vector<16x128xbf16>, vector<16x128xf32> -> vector<16x128xf32>
    %161 = arith.addf %157, %160 : vector<16x128xf32>
    %c0_75 = arith.constant 0 : index
    %c0_76 = arith.constant 0 : index
    %162 = vector.load %arg16[%c0_75, %c0_76] : memref<16x128xf32, #tpu.memory_space<vmem>>, vector<16x128xf32>
    tpu.vector_store %arg16[%c0_75, %c0_76], %161 {strides = array<i32>} : memref<16x128xf32, #tpu.memory_space<vmem>>, vector<16x128xf32>,
    return
  }
  func.func @transform_0(%arg0: i32) -> (i32, i32) {
    %c0_i32 = arith.constant 0 : i32
    %c0_i32_0 = arith.constant 0 : i32
    return %arg0, %c0_i32 : i32, i32
  }
  func.func @transform_1(%arg0: i32) -> (i32, i32) {
    %c0_i32 = arith.constant 0 : i32
    %c0_i32_0 = arith.constant 0 : i32
    %c0_i32_1 = arith.constant 0 : i32
    return %c0_i32, %c0_i32_0 : i32, i32
  }
  func.func @transform_2(%arg0: i32) -> (i32, i32) {
    %c0_i32 = arith.constant 0 : i32
    %c0_i32_0 = arith.constant 0 : i32
    %c0_i32_1 = arith.constant 0 : i32
    return %c0_i32, %c0_i32_0 : i32, i32
  }
  func.func @transform_3(%arg0: i32) -> (i32, i32) {
    %c0_i32 = arith.constant 0 : i32
    %c0_i32_0 = arith.constant 0 : i32
    %c0_i32_1 = arith.constant 0 : i32
    return %c0_i32, %c0_i32_0 : i32, i32
  }
  func.func @transform_4(%arg0: i32) -> (i32, i32) {
    %c0_i32 = arith.constant 0 : i32
    %c0_i32_0 = arith.constant 0 : i32
    %c0_i32_1 = arith.constant 0 : i32
    return %c0_i32, %c0_i32_0 : i32, i32
  }
  func.func @transform_5(%arg0: i32) -> (i32, i32) {
    %c0_i32 = arith.constant 0 : i32
    %c0_i32_0 = arith.constant 0 : i32
    %c0_i32_1 = arith.constant 0 : i32
    return %c0_i32, %c0_i32_0 : i32, i32
  }
  func.func @transform_6(%arg0: i32) -> (i32, i32) {
    %c0_i32 = arith.constant 0 : i32
    %c0_i32_0 = arith.constant 0 : i32
    %c0_i32_1 = arith.constant 0 : i32
    return %c0_i32, %c0_i32_0 : i32, i32
  }
  func.func @transform_7(%arg0: i32) -> (i32, i32) {
    %c0_i32 = arith.constant 0 : i32
    %c0_i32_0 = arith.constant 0 : i32
    %c0_i32_1 = arith.constant 0 : i32
    return %c0_i32, %c0_i32_0 : i32, i32
  }
  func.func @transform_8(%arg0: i32) -> (i32, i32) {
    %c0_i32 = arith.constant 0 : i32
    %c0_i32_0 = arith.constant 0 : i32
    %c0_i32_1 = arith.constant 0 : i32
    return %c0_i32, %c0_i32_0 : i32, i32
  }
  func.func @transform_9(%arg0: i32) -> (i32, i32) {
    %c0_i32 = arith.constant 0 : i32
    %c0_i32_0 = arith.constant 0 : i32
    %c0_i32_1 = arith.constant 0 : i32
    return %c0_i32, %c0_i32_0 : i32, i32
  }
  func.func @transform_10(%arg0: i32) -> (i32, i32) {
    %c0_i32 = arith.constant 0 : i32
    %c0_i32_0 = arith.constant 0 : i32
    %c0_i32_1 = arith.constant 0 : i32
    return %c0_i32, %c0_i32_0 : i32, i32
  }
  func.func @transform_11(%arg0: i32) -> (i32, i32) {
    %c0_i32 = arith.constant 0 : i32
    %c0_i32_0 = arith.constant 0 : i32
    %c0_i32_1 = arith.constant 0 : i32
    return %c0_i32, %c0_i32_0 : i32, i32
  }
  func.func @transform_12(%arg0: i32) -> (i32, i32) {
    %c0_i32 = arith.constant 0 : i32
    %c0_i32_0 = arith.constant 0 : i32
    %c0_i32_1 = arith.constant 0 : i32
    return %c0_i32, %c0_i32_0 : i32, i32
  }
  func.func @transform_13(%arg0: i32) -> (i32, i32) {
    %c0_i32 = arith.constant 0 : i32
    %c0_i32_0 = arith.constant 0 : i32
    %c0_i32_1 = arith.constant 0 : i32
    return %c0_i32, %c0_i32_0 : i32, i32
  }
  func.func @transform_14(%arg0: i32) -> (i32, i32) {
    %c0_i32 = arith.constant 0 : i32
    %c0_i32_0 = arith.constant 0 : i32
    %c0_i32_1 = arith.constant 0 : i32
    return %c0_i32, %c0_i32_0 : i32, i32
  }
  func.func @transform_15(%arg0: i32) -> (i32, i32) {
    %c0_i32 = arith.constant 0 : i32
    %c0_i32_0 = arith.constant 0 : i32
    return %arg0, %c0_i32 : i32, i32
  }
}

</mosaic_0001>

<llo_original>
// kernel: tpu_custom_call.1
$region0: #{tpu_custom_call.1}
  #allocation0 [shape = 'u32[]', space=smem, size = 0x4, offset = 0x4, fixed_abs, tag = 'smem constant byte address 0x4 - core index']
  #allocation1 [shape = 'u32[144,128]{1,0:T(1,128)}', space=vmem, size = 0x12000, scoped, tag = 'internal scratch']
  #allocation2 [shape = 'f32[16,16]{1,0:T(8,128)}', space=vmem, size = 0x2000, scoped, tag = 'scratch operand']
  #allocation3 [shape = 'f32[16,128]{1,0:T(8,128)}', space=vmem, size = 0x2000, scoped, tag = 'scratch operand']
  #allocation4 [shape = 'f32[16,128]{1,0:T(8,128)}', space=vmem, size = 0x2000, scoped, tag = 'scratch operand']
  #allocation5 [shape = 'f32[16,128]{1,0:T(8,128)}', space=vmem, size = 0x2000, scoped, tag = 'scratch operand']
  %s0 = inlined_call_operand.vmem [shape: bf16[32,32], index: 0, kind: input, shape index: {}]
  %s1 = inlined_call_operand.vmem [shape: bf16[32,32], index: 1, kind: input, shape index: {}]
  %s2 = inlined_call_operand.hbm [shape: f32[3,16], index: 2, kind: input, shape index: {}]
  %s3 = inlined_call_operand.vmem [shape: f32[1,16], index: 3, kind: input, shape index: {}]
  %s4 = inlined_call_operand.hbm [shape: f32[3,16], index: 4, kind: input, shape index: {}]
  %s5 = inlined_call_operand.vmem [shape: f32[1,16], index: 5, kind: input, shape index: {}]
  %s6 = inlined_call_operand.vmem [shape: bf16[16,32], index: 6, kind: input, shape index: {}]
  %s7 = inlined_call_operand.vmem [shape: f32[1,16], index: 7, kind: input, shape index: {}]
  %s8 = inlined_call_operand.vmem [shape: f32[1,128], index: 8, kind: input, shape index: {}]
  %s9 = inlined_call_operand.vmem [shape: f32[1,16], index: 9, kind: input, shape index: {}]
  %s10 = inlined_call_operand.vmem [shape: bf16[16,128], index: 10, kind: input, shape index: {}]
  %s11 = inlined_call_operand.vmem [shape: bf16[16,128], index: 11, kind: input, shape index: {}]
  %s12 = inlined_call_operand.vmem [shape: f32[16,128], index: 12, kind: input, shape index: {}]
  %s13 = inlined_call_operand.vmem [shape: f32[8,128], index: 13, kind: input, shape index: {}]
  %s14 = inlined_call_operand.vmem [shape: bf16[128,16], index: 14, kind: input, shape index: {}]
  %s15 = inlined_call_operand.hbm [shape: f32[32,128], index: 15, kind: output, shape index: {}]
  %s16 = sld [smem:[#allocation0]]
  $region108: #{tpu_custom_call.1} parent=0
    _
  %s18 = ssub.s32 1, %s16
  %s19 = scalar_select 0, %s18, %s16
  $region1: #{tpu_custom_call.1} parent=0
    #allocation6 [shape = 'u8[2048]{0}', space=vmem, size = 0x800, scoped, tag = 'input window, operand 2, single buffered']
    #allocation7 [shape = 's32[2]{0}', space=sflag, size = 0x8, scoped, tag = 'scoped memory for tpu_custom_call.1']
    #allocation8 [shape = 's32[2]{0}', space=sflag, size = 0x8, scoped, tag = 'scoped memory for tpu_custom_call.1']
    #allocation9 [shape = 'u8[2048]{0}', space=vmem, size = 0x800, scoped, tag = 'input window, operand 4, single buffered']
    #allocation10 [shape = 's32[1]{0}', space=sflag, size = 0x4, scoped, tag = 'scoped memory for tpu_custom_call.1']
    #allocation11 [shape = 'u8[16384]{0}', space=vmem, size = 0x4000, scoped, tag = 'output window, operand 0']
    %20 = vsyncpa [#allocation7], 0
    %21 = vsyncpa [#allocation10], 0
    %22 = vsyncpa [#allocation8], 0
    %s23 = scalar_lea.sflag [#allocation8], 1
    %24 = vsyncpa %s23, 0
    loop: start=0, step=1, limit=4
    $region2: #{tpu_custom_call.1} parent=1 // loop_pre_header
      _
    $region3: #{tpu_custom_call.1} parent=1 // loop_header
      %s26 = sphi 0, %s30
      %p27 = scmp.ge.s32.totalorder %s26, 4
      %s36 = sphi 0, %s38
      %s39 = sphi 0, %s36
      %s40 = sphi 0, %s39
      %s56 = sphi 0, %s40
      %s60 = sphi 0, %s60
      %s62 = sphi 0, %s60
      %s63 = sphi 0, %s62
      %s77 = sphi 0, %s63
      %s81 = sphi 0, %s81
      %s83 = sphi 0, %s81
      %s84 = sphi 0, %s83
      %s98 = sphi 0, %s84
      %s102 = sphi 0, %s102
      %s104 = sphi 0, %s102
      %s105 = sphi 0, %s104
      %s119 = sphi 0, %s105
      %s123 = sphi 0, %s123
      %s125 = sphi 0, %s123
      %s126 = sphi 0, %s125
      %s140 = sphi 0, %s126
      %s144 = sphi 0, %s144
      %s146 = sphi 0, %s144
      %s147 = sphi 0, %s146
      %s161 = sphi 0, %s147
      %s165 = sphi 0, %s165
      %s167 = sphi 0, %s165
      %s168 = sphi 0, %s167
      %s182 = sphi 0, %s168
      %s186 = sphi 0, %s186
      %s188 = sphi 0, %s186
      %s189 = sphi 0, %s188
      %s203 = sphi 0, %s189
      %s207 = sphi 0, %s207
      %s209 = sphi 0, %s207
      %s210 = sphi 0, %s209
      %s224 = sphi 0, %s210
      %s228 = sphi 0, %s228
      %s230 = sphi 0, %s228
      %s231 = sphi 0, %s230
      %s245 = sphi 0, %s231
      %s249 = sphi 0, %s249
      %s251 = sphi 0, %s249
      %s252 = sphi 0, %s251
      %s266 = sphi 0, %s252
      %s270 = sphi 0, %s270
      %s272 = sphi 0, %s270
      %s273 = sphi 0, %s272
      %s287 = sphi 0, %s273
      %s291 = sphi 0, %s291
      %s293 = sphi 0, %s291
      %s294 = sphi 0, %s293
      %s308 = sphi 0, %s294
      %s312 = sphi 0, %s312
      %s314 = sphi 0, %s312
      %s315 = sphi 0, %s314
      %s329 = sphi 0, %s315
      %s333 = sphi 0, %s333
      %s335 = sphi 0, %s333
      %s336 = sphi 0, %s335
      %s350 = sphi 0, %s336
      %s356 = sphi 0, %s358
      %s359 = sphi 0, %s356
      %s360 = sphi 0, %s359
      %s376 = sphi 0, %s360
    $region4: #{tpu_custom_call.1} parent=1 // loop_header_branch
      %29 = sbr.rel (%p27) target = $region8
    $region5: #{tpu_custom_call.1} parent=1 // loop_body
      %s31 = ssub.s32 %s26, 1
      %s32 = ssub.s32 %s26, 2
      %s33 = sadd.s32 %s26, 1
      %s34 = ssub.s32 %s26, %s33
      %p35 = scmp.eq.s32.totalorder %s34, 0
      %s37 = sadd.s32 %s36, 1
      %s38 = scalar_select %p35, %s36, %s37
      %p41 = pneg %p35
      %p42 = scmp.eq.s32.totalorder %s26, 1
      %p43 = por %p41, %p42
      %p44 = scmp.ne.s32.totalorder %s36, %s39
      %p45 = scmp.eq.s32.totalorder %s26, 0
      %p46 = por %p44, %p45
      %p47 = scmp.ne.s32.totalorder %s36, %s39
      %p48 = scmp.eq.s32.totalorder %s31, 1
      %p49 = por %p47, %p48
      %p50 = scmp.ne.s32.totalorder %s39, %s40
      %p51 = scmp.eq.s32.totalorder %s31, 0
      %p52 = por %p50, %p51
      %p53 = scmp.ne.s32.totalorder %s39, %s40
      %p54 = scmp.eq.s32.totalorder %s32, 1
      %p55 = por %p53, %p54
      %p57 = scmp.ne.s32.totalorder %s40, %s56
      %p58 = scmp.eq.s32.totalorder %s32, 0
      %p59 = por %p57, %p58
      %s61 = sadd.s32 %s60, 1
      %p64 = scmp.eq.s32.totalorder %s26, 1
      %p65 = scmp.ne.s32.totalorder %s60, %s62
      %p66 = scmp.eq.s32.totalorder %s26, 0
      %p67 = por %p65, %p66
      %p68 = scmp.ne.s32.totalorder %s60, %s62
      %p69 = scmp.eq.s32.totalorder %s31, 1
      %p70 = por %p68, %p69
      %p71 = scmp.ne.s32.totalorder %s62, %s63
      %p72 = scmp.eq.s32.totalorder %s31, 0
      %p73 = por %p71, %p72
      %p74 = scmp.ne.s32.totalorder %s62, %s63
      %p75 = scmp.eq.s32.totalorder %s32, 1
      %p76 = por %p74, %p75
      %p78 = scmp.ne.s32.totalorder %s63, %s77
      %p79 = scmp.eq.s32.totalorder %s32, 0
      %p80 = por %p78, %p79
      %s82 = sadd.s32 %s81, 1
      %p85 = scmp.eq.s32.totalorder %s26, 1
      %p86 = scmp.ne.s32.totalorder %s81, %s83
      %p87 = scmp.eq.s32.totalorder %s26, 0
      %p88 = por %p86, %p87
      %p89 = scmp.ne.s32.totalorder %s81, %s83
      %p90 = scmp.eq.s32.totalorder %s31, 1
      %p91 = por %p89, %p90
      %p92 = scmp.ne.s32.totalorder %s83, %s84
      %p93 = scmp.eq.s32.totalorder %s31, 0
      %p94 = por %p92, %p93
      %p95 = scmp.ne.s32.totalorder %s83, %s84
      %p96 = scmp.eq.s32.totalorder %s32, 1
      %p97 = por %p95, %p96
      %p99 = scmp.ne.s32.totalorder %s84, %s98
      %p100 = scmp.eq.s32.totalorder %s32, 0
      %p101 = por %p99, %p100
      %s103 = sadd.s32 %s102, 1
      %p106 = scmp.eq.s32.totalorder %s26, 1
      %p107 = scmp.ne.s32.totalorder %s102, %s104
      %p108 = scmp.eq.s32.totalorder %s26, 0
      %p109 = por %p107, %p108
      %p110 = scmp.ne.s32.totalorder %s102, %s104
      %p111 = scmp.eq.s32.totalorder %s31, 1
      %p112 = por %p110, %p111
      %p113 = scmp.ne.s32.totalorder %s104, %s105
      %p114 = scmp.eq.s32.totalorder %s31, 0
      %p115 = por %p113, %p114
      %p116 = scmp.ne.s32.totalorder %s104, %s105
      %p117 = scmp.eq.s32.totalorder %s32, 1
      %p118 = por %p116, %p117
      %p120 = scmp.ne.s32.totalorder %s105, %s119
      %p121 = scmp.eq.s32.totalorder %s32, 0
      %p122 = por %p120, %p121
      %s124 = sadd.s32 %s123, 1
      %p127 = scmp.eq.s32.totalorder %s26, 1
      %p128 = scmp.ne.s32.totalorder %s123, %s125
      %p129 = scmp.eq.s32.totalorder %s26, 0
      %p130 = por %p128, %p129
      %p131 = scmp.ne.s32.totalorder %s123, %s125
      %p132 = scmp.eq.s32.totalorder %s31, 1
      %p133 = por %p131, %p132
      %p134 = scmp.ne.s32.totalorder %s125, %s126
      %p135 = scmp.eq.s32.totalorder %s31, 0
      %p136 = por %p134, %p135
      %p137 = scmp.ne.s32.totalorder %s125, %s126
      %p138 = scmp.eq.s32.totalorder %s32, 1
      %p139 = por %p137, %p138
      %p141 = scmp.ne.s32.totalorder %s126, %s140
      %p142 = scmp.eq.s32.totalorder %s32, 0
      %p143 = por %p141, %p142
      %s145 = sadd.s32 %s144, 1
      %p148 = scmp.eq.s32.totalorder %s26, 1
      %p149 = scmp.ne.s32.totalorder %s144, %s146
      %p150 = scmp.eq.s32.totalorder %s26, 0
      %p151 = por %p149, %p150
      %p152 = scmp.ne.s32.totalorder %s144, %s146
      %p153 = scmp.eq.s32.totalorder %s31, 1
      %p154 = por %p152, %p153
      %p155 = scmp.ne.s32.totalorder %s146, %s147
      %p156 = scmp.eq.s32.totalorder %s31, 0
      %p157 = por %p155, %p156
      %p158 = scmp.ne.s32.totalorder %s146, %s147
      %p159 = scmp.eq.s32.totalorder %s32, 1
      %p160 = por %p158, %p159
      %p162 = scmp.ne.s32.totalorder %s147, %s161
      %p163 = scmp.eq.s32.totalorder %s32, 0
      %p164 = por %p162, %p163
      %s166 = sadd.s32 %s165, 1
      %p169 = scmp.eq.s32.totalorder %s26, 1
      %p170 = scmp.ne.s32.totalorder %s165, %s167
      %p171 = scmp.eq.s32.totalorder %s26, 0
      %p172 = por %p170, %p171
      %p173 = scmp.ne.s32.totalorder %s165, %s167
      %p174 = scmp.eq.s32.totalorder %s31, 1
      %p175 = por %p173, %p174
      %p176 = scmp.ne.s32.totalorder %s167, %s168
      %p177 = scmp.eq.s32.totalorder %s31, 0
      %p178 = por %p176, %p177
      %p179 = scmp.ne.s32.totalorder %s167, %s168
      %p180 = scmp.eq.s32.totalorder %s32, 1
      %p181 = por %p179, %p180
      %p183 = scmp.ne.s32.totalorder %s168, %s182
      %p184 = scmp.eq.s32.totalorder %s32, 0
      %p185 = por %p183, %p184
      %s187 = sadd.s32 %s186, 1
      %p190 = scmp.eq.s32.totalorder %s26, 1
      %p191 = scmp.ne.s32.totalorder %s186, %s188
      %p192 = scmp.eq.s32.totalorder %s26, 0
      %p193 = por %p191, %p192
      %p194 = scmp.ne.s32.totalorder %s186, %s188
      %p195 = scmp.eq.s32.totalorder %s31, 1
      %p196 = por %p194, %p195
      %p197 = scmp.ne.s32.totalorder %s188, %s189
      %p198 = scmp.eq.s32.totalorder %s31, 0
      %p199 = por %p197, %p198
      %p200 = scmp.ne.s32.totalorder %s188, %s189
      %p201 = scmp.eq.s32.totalorder %s32, 1
      %p202 = por %p200, %p201
      %p204 = scmp.ne.s32.totalorder %s189, %s203
      %p205 = scmp.eq.s32.totalorder %s32, 0
      %p206 = por %p204, %p205
      %s208 = sadd.s32 %s207, 1
      %p211 = scmp.eq.s32.totalorder %s26, 1
      %p212 = scmp.ne.s32.totalorder %s207, %s209
      %p213 = scmp.eq.s32.totalorder %s26, 0
      %p214 = por %p212, %p213
      %p215 = scmp.ne.s32.totalorder %s207, %s209
      %p216 = scmp.eq.s32.totalorder %s31, 1
      %p217 = por %p215, %p216
      %p218 = scmp.ne.s32.totalorder %s209, %s210
      %p219 = scmp.eq.s32.totalorder %s31, 0
      %p220 = por %p218, %p219
      %p221 = scmp.ne.s32.totalorder %s209, %s210
      %p222 = scmp.eq.s32.totalorder %s32, 1
      %p223 = por %p221, %p222
      %p225 = scmp.ne.s32.totalorder %s210, %s224
      %p226 = scmp.eq.s32.totalorder %s32, 0
      %p227 = por %p225, %p226
      %s229 = sadd.s32 %s228, 1
      %p232 = scmp.eq.s32.totalorder %s26, 1
      %p233 = scmp.ne.s32.totalorder %s228, %s230
      %p234 = scmp.eq.s32.totalorder %s26, 0
      %p235 = por %p233, %p234
      %p236 = scmp.ne.s32.totalorder %s228, %s230
      %p237 = scmp.eq.s32.totalorder %s31, 1
      %p238 = por %p236, %p237
      %p239 = scmp.ne.s32.totalorder %s230, %s231
      %p240 = scmp.eq.s32.totalorder %s31, 0
      %p241 = por %p239, %p240
      %p242 = scmp.ne.s32.totalorder %s230, %s231
      %p243 = scmp.eq.s32.totalorder %s32, 1
      %p244 = por %p242, %p243
      %p246 = scmp.ne.s32.totalorder %s231, %s245
      %p247 = scmp.eq.s32.totalorder %s32, 0
      %p248 = por %p246, %p247
      %s250 = sadd.s32 %s249, 1
      %p253 = scmp.eq.s32.totalorder %s26, 1
      %p254 = scmp.ne.s32.totalorder %s249, %s251
      %p255 = scmp.eq.s32.totalorder %s26, 0
      %p256 = por %p254, %p255
      %p257 = scmp.ne.s32.totalorder %s249, %s251
      %p258 = scmp.eq.s32.totalorder %s31, 1
      %p259 = por %p257, %p258
      %p260 = scmp.ne.s32.totalorder %s251, %s252
      %p261 = scmp.eq.s32.totalorder %s31, 0
      %p262 = por %p260, %p261
      %p263 = scmp.ne.s32.totalorder %s251, %s252
      %p264 = scmp.eq.s32.totalorder %s32, 1
      %p265 = por %p263, %p264
      %p267 = scmp.ne.s32.totalorder %s252, %s266
      %p268 = scmp.eq.s32.totalorder %s32, 0
      %p269 = por %p267, %p268
      %s271 = sadd.s32 %s270, 1
      %p274 = scmp.eq.s32.totalorder %s26, 1
      %p275 = scmp.ne.s32.totalorder %s270, %s272
      %p276 = scmp.eq.s32.totalorder %s26, 0
      %p277 = por %p275, %p276
      %p278 = scmp.ne.s32.totalorder %s270, %s272
      %p279 = scmp.eq.s32.totalorder %s31, 1
      %p280 = por %p278, %p279
      %p281 = scmp.ne.s32.totalorder %s272, %s273
      %p282 = scmp.eq.s32.totalorder %s31, 0
      %p283 = por %p281, %p282
      %p284 = scmp.ne.s32.totalorder %s272, %s273
      %p285 = scmp.eq.s32.totalorder %s32, 1
      %p286 = por %p284, %p285
      %p288 = scmp.ne.s32.totalorder %s273, %s287
      %p289 = scmp.eq.s32.totalorder %s32, 0
      %p290 = por %p288, %p289
      %s292 = sadd.s32 %s291, 1
      %p295 = scmp.eq.s32.totalorder %s26, 1
      %p296 = scmp.ne.s32.totalorder %s291, %s293
      %p297 = scmp.eq.s32.totalorder %s26, 0
      %p298 = por %p296, %p297
      %p299 = scmp.ne.s32.totalorder %s291, %s293
      %p300 = scmp.eq.s32.totalorder %s31, 1
      %p301 = por %p299, %p300
      %p302 = scmp.ne.s32.totalorder %s293, %s294
      %p303 = scmp.eq.s32.totalorder %s31, 0
      %p304 = por %p302, %p303
      %p305 = scmp.ne.s32.totalorder %s293, %s294
      %p306 = scmp.eq.s32.totalorder %s32, 1
      %p307 = por %p305, %p306
      %p309 = scmp.ne.s32.totalorder %s294, %s308
      %p310 = scmp.eq.s32.totalorder %s32, 0
      %p311 = por %p309, %p310
      %s313 = sadd.s32 %s312, 1
      %p316 = scmp.eq.s32.totalorder %s26, 1
      %p317 = scmp.ne.s32.totalorder %s312, %s314
      %p318 = scmp.eq.s32.totalorder %s26, 0
      %p319 = por %p317, %p318
      %p320 = scmp.ne.s32.totalorder %s312, %s314
      %p321 = scmp.eq.s32.totalorder %s31, 1
      %p322 = por %p320, %p321
      %p323 = scmp.ne.s32.totalorder %s314, %s315
      %p324 = scmp.eq.s32.totalorder %s31, 0
      %p325 = por %p323, %p324
      %p326 = scmp.ne.s32.totalorder %s314, %s315
      %p327 = scmp.eq.s32.totalorder %s32, 1
      %p328 = por %p326, %p327
      %p330 = scmp.ne.s32.totalorder %s315, %s329
      %p331 = scmp.eq.s32.totalorder %s32, 0
      %p332 = por %p330, %p331
      %s334 = sadd.s32 %s333, 1
      %p337 = scmp.eq.s32.totalorder %s26, 1
      %p338 = scmp.ne.s32.totalorder %s333, %s335
      %p339 = scmp.eq.s32.totalorder %s26, 0
      %p340 = por %p338, %p339
      %p341 = scmp.ne.s32.totalorder %s333, %s335
      %p342 = scmp.eq.s32.totalorder %s31, 1
      %p343 = por %p341, %p342
      %p344 = scmp.ne.s32.totalorder %s335, %s336
      %p345 = scmp.eq.s32.totalorder %s31, 0
      %p346 = por %p344, %p345
      %p347 = scmp.ne.s32.totalorder %s335, %s336
      %p348 = scmp.eq.s32.totalorder %s32, 1
      %p349 = por %p347, %p348
      %p351 = scmp.ne.s32.totalorder %s336, %s350
      %p352 = scmp.eq.s32.totalorder %s32, 0
      %p353 = por %p351, %p352
      %s354 = ssub.s32 %s26, %s33
      %p355 = scmp.eq.s32.totalorder %s354, 0
      %s357 = sadd.s32 %s356, 1
      %s358 = scalar_select %p355, %s356, %s357
      %p361 = pneg %p355
      %p362 = scmp.eq.s32.totalorder %s26, 1
      %p363 = por %p361, %p362
      %p364 = scmp.ne.s32.totalorder %s356, %s359
      %p365 = scmp.eq.s32.totalorder %s26, 0
      %p366 = por %p364, %p365
      %p367 = scmp.ne.s32.totalorder %s356, %s359
      %p368 = scmp.eq.s32.totalorder %s31, 1
      %p369 = por %p367, %p368
      %p370 = scmp.ne.s32.totalorder %s359, %s360
      %p371 = scmp.eq.s32.totalorder %s31, 0
      %p372 = por %p370, %p371
      %p373 = scmp.ne.s32.totalorder %s359, %s360
      %p374 = scmp.eq.s32.totalorder %s32, 1
      %p375 = por %p373, %p374
      %p377 = scmp.ne.s32.totalorder %s360, %s376
      %p378 = scmp.eq.s32.totalorder %s32, 0
      %p379 = por %p377, %p378
      %p380 = scmp.le.s32.totalorder 1, %s26
      %p381 = scmp.lt.s32.totalorder %s26, 3
      %p382 = pnand %p380, %p381
      %p383 = pneg %p382
      // Predicated region
      $region9: #{tpu_custom_call.1} parent=5 // pred_check
        _
      $region10: #{tpu_custom_call.1} parent=5 // pred_check_branch
        %385 = sbr.rel (%p382) target = $region12
      $region11: #{tpu_custom_call.1} parent=5 // pred_region
        %s386 = ssub.s32 %s26, 1
        // Predicated region
        $region13: #{tpu_custom_call.1} parent=11 // pred_check
          %p387 = pneg %p73
        $region14: #{tpu_custom_call.1} parent=11 // pred_check_branch
          %389 = sbr.rel (%p387) target = $region16
        $region15: #{tpu_custom_call.1} parent=11 // pred_region
          _
        $region16: #{tpu_custom_call.1} parent=11 // pred_fallthru
          _
        // Predicated region
        $region17: #{tpu_custom_call.1} parent=11 // pred_check
          %p390 = pneg %p94
        $region18: #{tpu_custom_call.1} parent=11 // pred_check_branch
          %392 = sbr.rel (%p390) target = $region20
        $region19: #{tpu_custom_call.1} parent=11 // pred_region
          %s394 = ssub.s32 64, 64
          %395 = vsyncadd [#allocation7], %s394
          %s397 = sshll.u32 [#allocation6], 4
          %s398 = int_to_ptr.vmem [resolvable:$true] %s397
          %400 = dma.hbm_to_vmem [thread:$0]  %s2, 64, %s398, [#allocation7]
        $region20: #{tpu_custom_call.1} parent=11 // pred_fallthru
          _
        // Predicated region
        $region21: #{tpu_custom_call.1} parent=11 // pred_check
          %p401 = pneg %p115
        $region22: #{tpu_custom_call.1} parent=11 // pred_check_branch
          %403 = sbr.rel (%p401) target = $region24
        $region23: #{tpu_custom_call.1} parent=11 // pred_region
          _
        $region24: #{tpu_custom_call.1} parent=11 // pred_fallthru
          _
        // Predicated region
        $region25: #{tpu_custom_call.1} parent=11 // pred_check
          %p404 = pneg %p136
        $region26: #{tpu_custom_call.1} parent=11 // pred_check_branch
          %406 = sbr.rel (%p404) target = $region28
        $region27: #{tpu_custom_call.1} parent=11 // pred_region
          %s408 = ssub.s32 64, 64
          %409 = vsyncadd [#allocation10], %s408
          %s411 = sshll.u32 [#allocation9], 4
          %s412 = int_to_ptr.vmem [resolvable:$true] %s411
          %414 = dma.hbm_to_vmem [thread:$0]  %s4, 64, %s412, [#allocation10]
        $region28: #{tpu_custom_call.1} parent=11 // pred_fallthru
          _
        // Predicated region
        $region29: #{tpu_custom_call.1} parent=11 // pred_check
          %p415 = pneg %p157
        $region30: #{tpu_custom_call.1} parent=11 // pred_check_branch
          %417 = sbr.rel (%p415) target = $region32
        $region31: #{tpu_custom_call.1} parent=11 // pred_region
          _
        $region32: #{tpu_custom_call.1} parent=11 // pred_fallthru
          _
        // Predicated region
        $region33: #{tpu_custom_call.1} parent=11 // pred_check
          %p418 = pneg %p178
        $region34: #{tpu_custom_call.1} parent=11 // pred_check_branch
          %420 = sbr.rel (%p418) target = $region36
        $region35: #{tpu_custom_call.1} parent=11 // pred_region
          _
        $region36: #{tpu_custom_call.1} parent=11 // pred_fallthru
          _
        // Predicated region
        $region37: #{tpu_custom_call.1} parent=11 // pred_check
          %p421 = pneg %p199
        $region38: #{tpu_custom_call.1} parent=11 // pred_check_branch
          %423 = sbr.rel (%p421) target = $region40
        $region39: #{tpu_custom_call.1} parent=11 // pred_region
          _
        $region40: #{tpu_custom_call.1} parent=11 // pred_fallthru
          _
        // Predicated region
        $region41: #{tpu_custom_call.1} parent=11 // pred_check
          %p424 = pneg %p220
        $region42: #{tpu_custom_call.1} parent=11 // pred_check_branch
          %426 = sbr.rel (%p424) target = $region44
        $region43: #{tpu_custom_call.1} parent=11 // pred_region
          _
        $region44: #{tpu_custom_call.1} parent=11 // pred_fallthru
          _
        // Predicated region
        $region45: #{tpu_custom_call.1} parent=11 // pred_check
          %p427 = pneg %p241
        $region46: #{tpu_custom_call.1} parent=11 // pred_check_branch
          %429 = sbr.rel (%p427) target = $region48
        $region47: #{tpu_custom_call.1} parent=11 // pred_region
          _
        $region48: #{tpu_custom_call.1} parent=11 // pred_fallthru
          _
        // Predicated region
        $region49: #{tpu_custom_call.1} parent=11 // pred_check
          %p430 = pneg %p262
        $region50: #{tpu_custom_call.1} parent=11 // pred_check_branch
          %432 = sbr.rel (%p430) target = $region52
        $region51: #{tpu_custom_call.1} parent=11 // pred_region
          _
        $region52: #{tpu_custom_call.1} parent=11 // pred_fallthru
          _
        // Predicated region
        $region53: #{tpu_custom_call.1} parent=11 // pred_check
          %p433 = pneg %p283
        $region54: #{tpu_custom_call.1} parent=11 // pred_check_branch
          %435 = sbr.rel (%p433) target = $region56
        $region55: #{tpu_custom_call.1} parent=11 // pred_region
          _
        $region56: #{tpu_custom_call.1} parent=11 // pred_fallthru
          _
        // Predicated region
        $region57: #{tpu_custom_call.1} parent=11 // pred_check
          %p436 = pneg %p304
        $region58: #{tpu_custom_call.1} parent=11 // pred_check_branch
          %438 = sbr.rel (%p436) target = $region60
        $region59: #{tpu_custom_call.1} parent=11 // pred_region
          _
        $region60: #{tpu_custom_call.1} parent=11 // pred_fallthru
          _
        // Predicated region
        $region61: #{tpu_custom_call.1} parent=11 // pred_check
          %p439 = pneg %p325
        $region62: #{tpu_custom_call.1} parent=11 // pred_check_branch
          %441 = sbr.rel (%p439) target = $region64
        $region63: #{tpu_custom_call.1} parent=11 // pred_region
          _
        $region64: #{tpu_custom_call.1} parent=11 // pred_fallthru
          _
        // Predicated region
        $region65: #{tpu_custom_call.1} parent=11 // pred_check
          %p442 = pneg %p346
        $region66: #{tpu_custom_call.1} parent=11 // pred_check_branch
          %444 = sbr.rel (%p442) target = $region68
        $region67: #{tpu_custom_call.1} parent=11 // pred_region
          _
        $region68: #{tpu_custom_call.1} parent=11 // pred_fallthru
          _
      $region12: #{tpu_custom_call.1} parent=5 // pred_fallthru
        _
      %p445 = scmp.lt.s32.totalorder %s26, 2
      // Predicated region
      $region69: #{tpu_custom_call.1} parent=5 // pred_check
        %p446 = pneg %p445
      $region70: #{tpu_custom_call.1} parent=5 // pred_check_branch
        %448 = sbr.rel (%p446) target = $region72
      $region71: #{tpu_custom_call.1} parent=5 // pred_region
        // Predicated region
        $region73: #{tpu_custom_call.1} parent=71 // pred_check
          %p449 = pneg %p46
        $region74: #{tpu_custom_call.1} parent=71 // pred_check_branch
          %451 = sbr.rel (%p449) target = $region76
        $region75: #{tpu_custom_call.1} parent=71 // pred_region
          %s452 = smul.u32 2, %s26
          %p453 = scmp.lt.s32.totalorder %s452, 3
          %s454 = scalar_select %p453, %s452, 3
          %s455 = smul.addr %s454, 4
          %s456 = scalar_lea.vmem %s0, %s455
          %s457 = smul.u32 2, %s26
        $region76: #{tpu_custom_call.1} parent=71 // pred_fallthru
          _
      $region72: #{tpu_custom_call.1} parent=5 // pred_fallthru
        _
      %p458 = scmp.le.s32.totalorder 1, %s26
      %p459 = scmp.lt.s32.totalorder %s26, 3
      %p460 = pnand %p458, %p459
      %p461 = pneg %p460
      // Predicated region
      $region77: #{tpu_custom_call.1} parent=5 // pred_check
        _
      $region78: #{tpu_custom_call.1} parent=5 // pred_check_branch
        %463 = sbr.rel (%p460) target = $region80
      $region79: #{tpu_custom_call.1} parent=5 // pred_region
        %s464 = ssub.s32 %s26, 1
        // Predicated region
        $region81: #{tpu_custom_call.1} parent=79 // pred_check
          %p465 = pneg %p94
        $region82: #{tpu_custom_call.1} parent=79 // pred_check_branch
          %467 = sbr.rel (%p465) target = $region84
        $region83: #{tpu_custom_call.1} parent=79 // pred_region
          %468 = dma.done [#allocation7], 64
        $region84: #{tpu_custom_call.1} parent=79 // pred_fallthru
          _
        // Predicated region
        $region85: #{tpu_custom_call.1} parent=79 // pred_check
          %p469 = pneg %p136
        $region86: #{tpu_custom_call.1} parent=79 // pred_check_branch
          %471 = sbr.rel (%p469) target = $region88
        $region87: #{tpu_custom_call.1} parent=79 // pred_region
          %472 = dma.done [#allocation10], 64
        $region88: #{tpu_custom_call.1} parent=79 // pred_fallthru
          _
        %s473 = smul.u32 2, %s31
        %p474 = scmp.lt.s32.totalorder %s473, 3
        %s475 = scalar_select %p474, %s473, 3
        %s476 = smul.addr %s475, 4
        %s477 = scalar_lea.vmem %s0, %s476
        %p478 = pneg %p52
        %p479 = pneg %p49
        %p480 = pneg %p73
        %p481 = pneg %p70
        %p482 = pneg %p94
        %p483 = pneg %p91
        %p484 = pneg %p115
        %p485 = pneg %p112
        %p486 = pneg %p136
        %p487 = pneg %p133
        %p488 = pneg %p157
        %p489 = pneg %p154
        %p490 = pneg %p178
        %p491 = pneg %p175
        %p492 = pneg %p199
        %p493 = pneg %p196
        %p494 = pneg %p220
        %p495 = pneg %p217
        %p496 = pneg %p241
        %p497 = pneg %p238
        %p498 = pneg %p262
        %p499 = pneg %p259
        %p500 = pneg %p283
        %p501 = pneg %p280
        %p502 = pneg %p304
        %p503 = pneg %p301
        %p504 = pneg %p325
        %p505 = pneg %p322
        %p506 = pneg %p346
        %p507 = pneg %p343
        %p508 = pneg %p372
        %p509 = pneg %p369
        %s510 = sand.u32 %s359, 1
        %s511 = scalar_lea.sflag [#allocation8], %s510
        %s512 = sand.u32 %s359, 1
        %s513 = smul.addr %s512, 16
        %s514 = scalar_lea.vmem [#allocation11], %s513
        %s515 = smul.u32 2, %s31
        %p516 = scmp.lt.s32.totalorder %s515, 3
        %s517 = scalar_select %p516, %s515, 3
        %s518 = smul.addr %s517, 4
        %s519 = scalar_lea.vmem %s0, %s518
        %s520 = smul.u32 2, %s31
        %s521 = smul.u32 2, %s31
        %v523 = vlaneseq
        %v524 = vshrl.u32 %v523, 7
        %v525 = vadd.s32 %v524, 8
        %vm526 = vcmp.lt.s32.totalorder %v524, 0
        %v527 = vsub.s32 0, %v524
        %v528 = vsel %vm526, %v527, %v524
        %v529 = vshrl.u32 %v528, 4
        %v530 = vand.u32 %v528, 15
        %v531 = vsub.s32 0, %v530
        %v532 = vsel %vm526, %v531, %v530
        %vm533 = vcmp.lt.s32.totalorder %v525, 0
        %v534 = vsub.s32 0, %v525
        %v535 = vsel %vm533, %v534, %v525
        %v536 = vshrl.u32 %v535, 4
        %v537 = vand.u32 %v535, 15
        %v538 = vsub.s32 0, %v537
        %v539 = vsel %vm533, %v538, %v537
        %vm540 = vcmp.ne.s32.totalorder %v532, 0
        %vm541 = vcmp.ne.s32.totalorder %v539, 0
        %vm542 = vcmp.lt.s32.totalorder %v532, 0
        %vm543 = vcmp.lt.s32.totalorder %v539, 0
        %vm544 = vmand %vm542, %vm540
        %vm545 = vmand %vm543, %vm541
        %v546 = vadd.s32 %v532, 16
        %v547 = vadd.s32 %v539, 16
        %v548 = vsel %vm544, %v546, %v532
        %v549 = vsel %vm545, %v547, %v539
        %vm550 = vcmp.eq.s32.totalorder %v548, 0
        %vm551 = vcmp.eq.s32.totalorder %v549, 0
        %vm552 = vcmp.eq.s32.totalorder %v548, 15
        %vm553 = vcmp.eq.s32.totalorder %v549, 15
        %v554 = vld [vmem:[%s519] sm:$0xf]
        %v555 = vld [vmem:[%s519 + $0x4] sm:$0xf]
        %v556 = vld [vmem:[%s1] sm:$0xf]
        %v557 = vld [vmem:[%s1 + $0x4] sm:$0xf]
        %v558 = vld [vmem:[%s1 + $0x8] sm:$0xf]
        %v559 = vld [vmem:[%s1 + $0xc] sm:$0xf]
        %v562 = vunpack.c.l.b16 %v554
        %v563 = vunpack.c.l.b16 %v555
        %v564 = vpack.c.b16 %v563, %v562
        %v569 = vunpack.c.l.b16 %v556
        %v570 = vunpack.c.l.b16 %v557
        %v571 = vunpack.c.l.b16 %v558
        %v572 = vunpack.c.l.b16 %v559
        %v573 = vpack.c.b16 %v570, %v569
        %v574 = vpack.c.b16 %v572, %v571
        %vm577 = vcmask 261120
        %v579 = vsel %vm577, %v564, 0
        %581 = vmatprep.subr.bf16.mxu0 0
        %582 = vmatpush1.bf16.msra.mxu0 %v573
        %583 = vmatprep.subr.bf16.mxu0 0
        %584 = vmatpush1.bf16.msra.mxu0 %v574
        %585 = vmatprep.subr.bf16.mxu0 0
        %586 = vmatpush1.bf16.msra.mxu0 0
        %587 = vmatprep.subr.bf16.mxu0 0
        %588 = vmatpush1.bf16.msra.mxu0 0
        %589 = vmatprep.subr.bf16.mxu0 0
        %590 = vmatpush1.bf16.msra.mxu0 0
        %591 = vmatprep.subr.bf16.mxu0 0
        %592 = vmatpush1.bf16.msra.mxu0 0
        %593 = vmatprep.subr.bf16.mxu0 0
        %594 = vmatpush1.bf16.msra.mxu0 0
        %595 = vmatprep.subr.bf16.mxu0 0
        %596 = vmatpush1.bf16.msra.mxu0 0
        %597 = vmatprep.subr.bf16.mxu0 0
        %598 = vmatpush1.bf16.msra.mxu0 0
        %599 = vmatprep.subr.bf16.mxu0 0
        %600 = vmatpush1.bf16.msra.mxu0 0
        %601 = vmatprep.subr.bf16.mxu0 0
        %602 = vmatpush1.bf16.msra.mxu0 0
        %603 = vmatprep.subr.bf16.mxu0 0
        %604 = vmatpush1.bf16.msra.mxu0 0
        %605 = vmatprep.subr.bf16.mxu0 0
        %606 = vmatpush1.bf16.msra.mxu0 0
        %607 = vmatprep.subr.bf16.mxu0 0
        %608 = vmatpush1.bf16.msra.mxu0 0
        %609 = vmatprep.subr.bf16.mxu0 0
        %610 = vmatpush1.bf16.msra.mxu0 0
        %611 = vmatprep.subr.bf16.mxu0 0
        %612 = vmatpush1.bf16.msra.mxu0 0
        %613 = vmatprep.mubr.bf16.mxu0 0
        %614 = vmatmul.mubr.bf16.gmra.mrb[0].mxu0 %v579
        %v615 = vpop.f32.mrb[0].mxu0
        %v616 = vadd.f32 0.0, %v615
        %v617 = vpop.f32.mrb[0].mxu0
        %v618 = vpop.f32.mrb[0].mxu0
        %v619 = vadd.f32 0.0, %v618
        %v620 = vpop.f32.mrb[0].mxu0
        %621 = vdwg.mxu0
        %624 = vrot.lane.b32.xlu0 %v616, 112
        %v625 = vpop.permute.xlu0 %624
        %626 = vrot.lane.b32.xlu0 %v619, 112
        %v627 = vpop.permute.xlu0 %626
        %vm630 = vcmask 130048
        %631 = vst.msk [vmem:[#allocation2] sm:$0xff] %vm630, %v625
        %632 = vst.msk [vmem:[#allocation2 + $0x8] sm:$0xff] %vm630, %v627
        %v633 = vld [vmem:[#allocation6] sm:$0x7]
        %v634 = vld [vmem:[%s3] sm:$0x1]
        %vm635 = vcmask 1040384
        %v636 = vrot.slane %v616, 7
        %v637 = vrot.slane %v619, 7
        %v638 = vsel %vm635, %v636, %v637
        %v641 = vsel %vm635, 0.0, %v636
        %v642 = vsel %vm550, 0.0, %v641
        %v643 = vsel %vm551, 0.0, %v638
        %vm644 = vcmask 1046528
        %v645 = vrot.slane %v616, 1
        %v646 = vrot.slane %v619, 1
        %v647 = vsel %vm644, %v645, %v646
        %v650 = vsel %vm644, %v646, 0.0
        %v651 = vsel %vm552, 0.0, %v647
        %v652 = vsel %vm553, 0.0, %v650
        %v653 = vlaneseq
        %v654 = vshrl.u32 %v653, 7
        %v655 = vsub.s32 0, %v654
        %v656 = vrot.slane %v633, %v655
        %v657 = vmul.f32 %v642, %v656
        %v658 = vmul.f32 %v643, %v656
        %v659 = vlaneseq
        %v660 = vshrl.u32 %v659, 7
        %v661 = vsub.s32 1, %v660
        %v662 = vrot.slane %v633, %v661
        %v663 = vmul.f32 %v616, %v662
        %v664 = vmul.f32 %v619, %v662
        %v665 = vadd.f32 %v657, %v663
        %v666 = vadd.f32 %v658, %v664
        %v667 = vlaneseq
        %v668 = vshrl.u32 %v667, 7
        %v669 = vsub.s32 2, %v668
        %v670 = vrot.slane %v633, %v669
        %v671 = vmul.f32 %v651, %v670
        %v672 = vmul.f32 %v652, %v670
        %v673 = vadd.f32 %v665, %v671
        %v674 = vadd.f32 %v666, %v672
        %v676 = vlaneseq
        %v677 = vshrl.u32 %v676, 7
        %v678 = vsub.s32 0, %v677
        %v679 = vrot.slane %v634, %v678
        %v681 = vadd.f32 %v673, %v679
        %v682 = vadd.f32 %v674, %v679
        %v683 = vxor.u32 %v681, 2147483648
        %v684 = vxor.u32 %v682, 2147483648
        %v685 = vmul.f32 %v683, 1.442695
        %v686 = vpow.pop %v685
        %v687 = vmul.f32 %v684, 1.442695
        %v688 = vpow.pop %v687
        %v689 = vadd.f32 %v686, 1.0
        %v690 = vadd.f32 %v688, 1.0
        %v691 = vrcp.pop %v689
        %v692 = vmul.f32 1.0, %v691
        %v693 = vrcp.pop %v690
        %v694 = vmul.f32 1.0, %v693
        %v695 = vmul.f32 %v681, %v692
        %v696 = vmul.f32 %v682, %v694
        %v697 = vpack.c.bf16 %v696, %v695
        %v698 = vld [vmem:[%s6] sm:$0xf]
        %v699 = vld [vmem:[%s6 + $0x4] sm:$0xf]
        %v702 = vunpack.c.l.b16 %v698
        %v703 = vunpack.c.l.b16 %v699
        %v704 = vpack.c.b16 %v703, %v702
        %v707 = vsel %vm630, %v697, 0
        %709 = vmatprep.subr.bf16.mxu0 0
        %710 = vmatpush1.bf16.msra.mxu0 %v704
        %711 = vmatprep.subr.bf16.mxu0 0
        %712 = vmatpush1.bf16.msra.mxu0 0
        %713 = vmatprep.subr.bf16.mxu0 0
        %714 = vmatpush1.bf16.msra.mxu0 0
        %715 = vmatprep.subr.bf16.mxu0 0
        %716 = vmatpush1.bf16.msra.mxu0 0
        %717 = vmatprep.subr.bf16.mxu0 0
        %718 = vmatpush1.bf16.msra.mxu0 0
        %719 = vmatprep.subr.bf16.mxu0 0
        %720 = vmatpush1.bf16.msra.mxu0 0
        %721 = vmatprep.subr.bf16.mxu0 0
        %722 = vmatpush1.bf16.msra.mxu0 0
        %723 = vmatprep.subr.bf16.mxu0 0
        %724 = vmatpush1.bf16.msra.mxu0 0
        %725 = vmatprep.subr.bf16.mxu0 0
        %726 = vmatpush1.bf16.msra.mxu0 0
        %727 = vmatprep.subr.bf16.mxu0 0
        %728 = vmatpush1.bf16.msra.mxu0 0
        %729 = vmatprep.subr.bf16.mxu0 0
        %730 = vmatpush1.bf16.msra.mxu0 0
        %731 = vmatprep.subr.bf16.mxu0 0
        %732 = vmatpush1.bf16.msra.mxu0 0
        %733 = vmatprep.subr.bf16.mxu0 0
        %734 = vmatpush1.bf16.msra.mxu0 0
        %735 = vmatprep.subr.bf16.mxu0 0
        %736 = vmatpush1.bf16.msra.mxu0 0
        %737 = vmatprep.subr.bf16.mxu0 0
        %738 = vmatpush1.bf16.msra.mxu0 0
        %739 = vmatprep.subr.bf16.mxu0 0
        %740 = vmatpush1.bf16.msra.mxu0 0
        %741 = vmatprep.mubr.bf16.mxu0 0
        %742 = vmatmul.mubr.bf16.gmra.mrb[0].mxu0 %v707
        %v743 = vpop.f32.mrb[0].mxu0
        %v744 = vadd.f32 0.0, %v743
        %v745 = vpop.f32.mrb[0].mxu0
        %v746 = vpop.f32.mrb[0].mxu0
        %v747 = vadd.f32 0.0, %v746
        %v748 = vpop.f32.mrb[0].mxu0
        %749 = vdwg.mxu0
        %v750 = vld [vmem:[%s7] sm:$0x1]
        %v752 = vlaneseq
        %v753 = vshrl.u32 %v752, 7
        %v754 = vsub.s32 0, %v753
        %v755 = vrot.slane %v750, %v754
        %v757 = vadd.f32 %v744, %v755
        %v758 = vadd.f32 %v747, %v755
        %vm759 = vcmp.gt.f32.partialorder %v757, 20.0
        %vm760 = vcmp.gt.f32.partialorder %v758, 20.0
        %v761 = vmin.f32 %v757, 20.0
        %v762 = vmin.f32 %v758, 20.0
        %v763 = vmul.f32 %v761, 1.442695
        %v764 = vpow.pop %v763
        %v765 = vmul.f32 %v762, 1.442695
        %v766 = vpow.pop %v765
        %v767 = vadd.f32 %v764, 1.0
        %v768 = vlog2.pop %v767
        %v769 = vmul.f32 %v768, 0.6931472
        %v770 = vmul.f32 -0.5, %v764
        %v771 = vadd.f32 %v770, 1.0
        %v772 = vmul.f32 %v771, %v764
        %v773 = vand.u32 2147483647, %v764
        %vm774 = vcmp.lt.f32.partialorder %v773, 0.0004427343
        %v775 = vsel %vm774, %v772, %v769
        %v776 = vadd.f32 %v766, 1.0
        %v777 = vlog2.pop %v776
        %v778 = vmul.f32 %v777, 0.6931472
        %v779 = vmul.f32 -0.5, %v766
        %v780 = vadd.f32 %v779, 1.0
        %v781 = vmul.f32 %v780, %v766
        %v782 = vand.u32 2147483647, %v766
        %vm783 = vcmp.lt.f32.partialorder %v782, 0.0004427343
        %v784 = vsel %vm783, %v781, %v778
        %v785 = vsel %vm759, %v757, %v775
        %v786 = vsel %vm760, %v758, %v784
        %v787 = vld [vmem:[%s12] sm:$0xff]
        %v788 = vld [vmem:[%s12 + $0x8] sm:$0xff]
        %v790 = vsel %vm630, %v785, 0
        %v793 = vsel %vm630, %v786, 0
        %795 = vmatprep.subr.mxu0 0.0
        %796 = vmatpush1.msra.mxu0 %v787
        %797 = vmatprep.subr.mxu0 0.0
        %798 = vmatpush1.msra.mxu0 %v788
        %799 = vmatprep.subr.mxu0 0.0
        %800 = vmatpush1.msra.mxu0 0.0
        %801 = vmatprep.subr.mxu0 0.0
        %802 = vmatpush1.msra.mxu0 0.0
        %803 = vmatprep.subr.mxu0 0.0
        %804 = vmatpush1.msra.mxu0 0.0
        %805 = vmatprep.subr.mxu0 0.0
        %806 = vmatpush1.msra.mxu0 0.0
        %807 = vmatprep.subr.mxu0 0.0
        %808 = vmatpush1.msra.mxu0 0.0
        %809 = vmatprep.subr.mxu0 0.0
        %810 = vmatpush1.msra.mxu0 0.0
        %811 = vmatprep.subr.mxu0 0.0
        %812 = vmatpush1.msra.mxu0 0.0
        %813 = vmatprep.subr.mxu0 0.0
        %814 = vmatpush1.msra.mxu0 0.0
        %815 = vmatprep.subr.mxu0 0.0
        %816 = vmatpush1.msra.mxu0 0.0
        %817 = vmatprep.subr.mxu0 0.0
        %818 = vmatpush1.msra.mxu0 0.0
        %819 = vmatprep.subr.mxu0 0.0
        %820 = vmatpush1.msra.mxu0 0.0
        %821 = vmatprep.subr.mxu0 0.0
        %822 = vmatpush1.msra.mxu0 0.0
        %823 = vmatprep.subr.mxu0 0.0
        %824 = vmatpush1.msra.mxu0 0.0
        %825 = vmatprep.subr.mxu0 0.0
        %826 = vmatpush1.msra.mxu0 0.0
        %827 = vmatprep.subr.mxu0 0.0
        %828 = vmatpush1.msra.mxu0 0.0
        %829 = vmatprep.subr.mxu0 0.0
        %830 = vmatpush1.msra.mxu0 0.0
        %831 = vmatprep.subr.mxu0 0.0
        %832 = vmatpush1.msra.mxu0 0.0
        %833 = vmatprep.subr.mxu0 0.0
        %834 = vmatpush1.msra.mxu0 0.0
        %835 = vmatprep.subr.mxu0 0.0
        %836 = vmatpush1.msra.mxu0 0.0
        %837 = vmatprep.subr.mxu0 0.0
        %838 = vmatpush1.msra.mxu0 0.0
        %839 = vmatprep.subr.mxu0 0.0
        %840 = vmatpush1.msra.mxu0 0.0
        %841 = vmatprep.subr.mxu0 0.0
        %842 = vmatpush1.msra.mxu0 0.0
        %843 = vmatprep.subr.mxu0 0.0
        %844 = vmatpush1.msra.mxu0 0.0
        %845 = vmatprep.subr.mxu0 0.0
        %846 = vmatpush1.msra.mxu0 0.0
        %847 = vmatprep.subr.mxu0 0.0
        %848 = vmatpush1.msra.mxu0 0.0
        %849 = vmatprep.subr.mxu0 0.0
        %850 = vmatpush1.msra.mxu0 0.0
        %851 = vmatprep.subr.mxu0 0.0
        %852 = vmatpush1.msra.mxu0 0.0
        %853 = vmatprep.subr.mxu0 0.0
        %854 = vmatpush1.msra.mxu0 0.0
        %855 = vmatprep.subr.mxu0 0.0
        %856 = vmatpush1.msra.mxu0 0.0
        %857 = vmatprep.subr.mxu0 0.0
        %858 = vmatpush1.msra.mxu0 0.0
        %859 = vmatprep.mubr.f32.mxu0 0.0
        %860 = vmatmul.mubr.f32.gmra.mrb[0].mxu0 %v790
        %v861 = vpop.f32.mrb[0].mxu0
        %v862 = vadd.f32 0.0, %v861
        %v863 = vpop.f32.mrb[0].mxu0
        %864 = vmatprep.mubr.f32.mxu0 0.0
        %865 = vmatmul.mubr.f32.gmra.mrb[0].mxu0 %v793
        %v866 = vpop.f32.mrb[0].mxu0
        %v867 = vadd.f32 0.0, %v866
        %v868 = vpop.f32.mrb[0].mxu0
        %869 = vdwg.mxu0
        %v870 = vmul.f32 %v785, %v695
        %v871 = vmul.f32 %v786, %v696
        %v873 = vsel %vm630, %v870, 0
        %v876 = vsel %vm630, %v871, 0
        %878 = vmatprep.subr.mxu0 0.0
        %879 = vmatpush1.msra.mxu0 %v787
        %880 = vmatprep.subr.mxu0 0.0
        %881 = vmatpush1.msra.mxu0 %v788
        %882 = vmatprep.subr.mxu0 0.0
        %883 = vmatpush1.msra.mxu0 0.0
        %884 = vmatprep.subr.mxu0 0.0
        %885 = vmatpush1.msra.mxu0 0.0
        %886 = vmatprep.subr.mxu0 0.0
        %887 = vmatpush1.msra.mxu0 0.0
        %888 = vmatprep.subr.mxu0 0.0
        %889 = vmatpush1.msra.mxu0 0.0
        %890 = vmatprep.subr.mxu0 0.0
        %891 = vmatpush1.msra.mxu0 0.0
        %892 = vmatprep.subr.mxu0 0.0
        %893 = vmatpush1.msra.mxu0 0.0
        %894 = vmatprep.subr.mxu0 0.0
        %895 = vmatpush1.msra.mxu0 0.0
        %896 = vmatprep.subr.mxu0 0.0
        %897 = vmatpush1.msra.mxu0 0.0
        %898 = vmatprep.subr.mxu0 0.0
        %899 = vmatpush1.msra.mxu0 0.0
        %900 = vmatprep.subr.mxu0 0.0
        %901 = vmatpush1.msra.mxu0 0.0
        %902 = vmatprep.subr.mxu0 0.0
        %903 = vmatpush1.msra.mxu0 0.0
        %904 = vmatprep.subr.mxu0 0.0
        %905 = vmatpush1.msra.mxu0 0.0
        %906 = vmatprep.subr.mxu0 0.0
        %907 = vmatpush1.msra.mxu0 0.0
        %908 = vmatprep.subr.mxu0 0.0
        %909 = vmatpush1.msra.mxu0 0.0
        %910 = vmatprep.subr.mxu0 0.0
        %911 = vmatpush1.msra.mxu0 0.0
        %912 = vmatprep.subr.mxu0 0.0
        %913 = vmatpush1.msra.mxu0 0.0
        %914 = vmatprep.subr.mxu0 0.0
        %915 = vmatpush1.msra.mxu0 0.0
        %916 = vmatprep.subr.mxu0 0.0
        %917 = vmatpush1.msra.mxu0 0.0
        %918 = vmatprep.subr.mxu0 0.0
        %919 = vmatpush1.msra.mxu0 0.0
        %920 = vmatprep.subr.mxu0 0.0
        %921 = vmatpush1.msra.mxu0 0.0
        %922 = vmatprep.subr.mxu0 0.0
        %923 = vmatpush1.msra.mxu0 0.0
        %924 = vmatprep.subr.mxu0 0.0
        %925 = vmatpush1.msra.mxu0 0.0
        %926 = vmatprep.subr.mxu0 0.0
        %927 = vmatpush1.msra.mxu0 0.0
        %928 = vmatprep.subr.mxu0 0.0
        %929 = vmatpush1.msra.mxu0 0.0
        %930 = vmatprep.subr.mxu0 0.0
        %931 = vmatpush1.msra.mxu0 0.0
        %932 = vmatprep.subr.mxu0 0.0
        %933 = vmatpush1.msra.mxu0 0.0
        %934 = vmatprep.subr.mxu0 0.0
        %935 = vmatpush1.msra.mxu0 0.0
        %936 = vmatprep.subr.mxu0 0.0
        %937 = vmatpush1.msra.mxu0 0.0
        %938 = vmatprep.subr.mxu0 0.0
        %939 = vmatpush1.msra.mxu0 0.0
        %940 = vmatprep.subr.mxu0 0.0
        %941 = vmatpush1.msra.mxu0 0.0
        %942 = vmatprep.mubr.f32.mxu0 0.0
        %943 = vmatmul.mubr.f32.gmra.mrb[0].mxu0 %v873
        %v944 = vpop.f32.mrb[0].mxu0
        %v945 = vadd.f32 0.0, %v944
        %v946 = vpop.f32.mrb[0].mxu0
        %947 = vmatprep.mubr.f32.mxu0 0.0
        %948 = vmatmul.mubr.f32.gmra.mrb[0].mxu0 %v876
        %v949 = vpop.f32.mrb[0].mxu0
        %v950 = vadd.f32 0.0, %v949
        %v951 = vpop.f32.mrb[0].mxu0
        %952 = vdwg.mxu0
        %v953 = vld [vmem:[%s13] sm:$0xff]
        %956 = vrot.lane.b32.xlu0 %v744, 112
        %v957 = vpop.permute.xlu0 %956
        %958 = vrot.lane.b32.xlu0 %v747, 112
        %v959 = vpop.permute.xlu0 %958
        %vm960 = vcmask 64512
        %v961 = vsel %vm960, %v957, 0
        %v963 = vsel %vm960, %v959, 0
        %965 = vmatprep.subr.mxu0 0.0
        %966 = vmatpush1.msra.mxu0 %v953
        %967 = vmatprep.subr.mxu0 0.0
        %968 = vmatpush1.msra.mxu0 0.0
        %969 = vmatprep.subr.mxu0 0.0
        %970 = vmatpush1.msra.mxu0 0.0
        %971 = vmatprep.subr.mxu0 0.0
        %972 = vmatpush1.msra.mxu0 0.0
        %973 = vmatprep.subr.mxu0 0.0
        %974 = vmatpush1.msra.mxu0 0.0
        %975 = vmatprep.subr.mxu0 0.0
        %976 = vmatpush1.msra.mxu0 0.0
        %977 = vmatprep.subr.mxu0 0.0
        %978 = vmatpush1.msra.mxu0 0.0
        %979 = vmatprep.subr.mxu0 0.0
        %980 = vmatpush1.msra.mxu0 0.0
        %981 = vmatprep.subr.mxu0 0.0
        %982 = vmatpush1.msra.mxu0 0.0
        %983 = vmatprep.subr.mxu0 0.0
        %984 = vmatpush1.msra.mxu0 0.0
        %985 = vmatprep.subr.mxu0 0.0
        %986 = vmatpush1.msra.mxu0 0.0
        %987 = vmatprep.subr.mxu0 0.0
        %988 = vmatpush1.msra.mxu0 0.0
        %989 = vmatprep.subr.mxu0 0.0
        %990 = vmatpush1.msra.mxu0 0.0
        %991 = vmatprep.subr.mxu0 0.0
        %992 = vmatpush1.msra.mxu0 0.0
        %993 = vmatprep.subr.mxu0 0.0
        %994 = vmatpush1.msra.mxu0 0.0
        %995 = vmatprep.subr.mxu0 0.0
        %996 = vmatpush1.msra.mxu0 0.0
        %997 = vmatprep.subr.mxu0 0.0
        %998 = vmatpush1.msra.mxu0 0.0
        %999 = vmatprep.subr.mxu0 0.0
        %1000 = vmatpush1.msra.mxu0 0.0
        %1001 = vmatprep.subr.mxu0 0.0
        %1002 = vmatpush1.msra.mxu0 0.0
        %1003 = vmatprep.subr.mxu0 0.0
        %1004 = vmatpush1.msra.mxu0 0.0
        %1005 = vmatprep.subr.mxu0 0.0
        %1006 = vmatpush1.msra.mxu0 0.0
        %1007 = vmatprep.subr.mxu0 0.0
        %1008 = vmatpush1.msra.mxu0 0.0
        %1009 = vmatprep.subr.mxu0 0.0
        %1010 = vmatpush1.msra.mxu0 0.0
        %1011 = vmatprep.subr.mxu0 0.0
        %1012 = vmatpush1.msra.mxu0 0.0
        %1013 = vmatprep.subr.mxu0 0.0
        %1014 = vmatpush1.msra.mxu0 0.0
        %1015 = vmatprep.subr.mxu0 0.0
        %1016 = vmatpush1.msra.mxu0 0.0
        %1017 = vmatprep.subr.mxu0 0.0
        %1018 = vmatpush1.msra.mxu0 0.0
        %1019 = vmatprep.subr.mxu0 0.0
        %1020 = vmatpush1.msra.mxu0 0.0
        %1021 = vmatprep.subr.mxu0 0.0
        %1022 = vmatpush1.msra.mxu0 0.0
        %1023 = vmatprep.subr.mxu0 0.0
        %1024 = vmatpush1.msra.mxu0 0.0
        %1025 = vmatprep.subr.mxu0 0.0
        %1026 = vmatpush1.msra.mxu0 0.0
        %1027 = vmatprep.subr.mxu0 0.0
        %1028 = vmatpush1.msra.mxu0 0.0
        %1029 = vmatprep.mubr.f32.mxu0 0.0
        %1030 = vmatmul.mubr.f32.gmra.mrb[0].mxu0 %v961
        %v1031 = vpop.f32.mrb[0].mxu0
        %v1032 = vadd.f32 0.0, %v1031
        %v1033 = vpop.f32.mrb[0].mxu0
        %1034 = vmatprep.mubr.f32.mxu0 0.0
        %1035 = vmatmul.mubr.f32.gmra.mrb[0].mxu0 %v963
        %v1036 = vpop.f32.mrb[0].mxu0
        %v1037 = vadd.f32 0.0, %v1036
        %v1038 = vpop.f32.mrb[0].mxu0
        %1039 = vdwg.mxu0
        %1040 = vrot.lane.b32.xlu0 %v744, 104
        %v1041 = vpop.permute.xlu0 %1040
        %1042 = vrot.lane.b32.xlu0 %v747, 104
        %v1043 = vpop.permute.xlu0 %1042
        %v1044 = vsel %vm960, %v1041, 0
        %v1046 = vsel %vm960, %v1043, 0
        %1048 = vmatprep.subr.mxu0 0.0
        %1049 = vmatpush1.msra.mxu0 %v953
        %1050 = vmatprep.subr.mxu0 0.0
        %1051 = vmatpush1.msra.mxu0 0.0
        %1052 = vmatprep.subr.mxu0 0.0
        %1053 = vmatpush1.msra.mxu0 0.0
        %1054 = vmatprep.subr.mxu0 0.0
        %1055 = vmatpush1.msra.mxu0 0.0
        %1056 = vmatprep.subr.mxu0 0.0
        %1057 = vmatpush1.msra.mxu0 0.0
        %1058 = vmatprep.subr.mxu0 0.0
        %1059 = vmatpush1.msra.mxu0 0.0
        %1060 = vmatprep.subr.mxu0 0.0
        %1061 = vmatpush1.msra.mxu0 0.0
        %1062 = vmatprep.subr.mxu0 0.0
        %1063 = vmatpush1.msra.mxu0 0.0
        %1064 = vmatprep.subr.mxu0 0.0
        %1065 = vmatpush1.msra.mxu0 0.0
        %1066 = vmatprep.subr.mxu0 0.0
        %1067 = vmatpush1.msra.mxu0 0.0
        %1068 = vmatprep.subr.mxu0 0.0
        %1069 = vmatpush1.msra.mxu0 0.0
        %1070 = vmatprep.subr.mxu0 0.0
        %1071 = vmatpush1.msra.mxu0 0.0
        %1072 = vmatprep.subr.mxu0 0.0
        %1073 = vmatpush1.msra.mxu0 0.0
        %1074 = vmatprep.subr.mxu0 0.0
        %1075 = vmatpush1.msra.mxu0 0.0
        %1076 = vmatprep.subr.mxu0 0.0
        %1077 = vmatpush1.msra.mxu0 0.0
        %1078 = vmatprep.subr.mxu0 0.0
        %1079 = vmatpush1.msra.mxu0 0.0
        %1080 = vmatprep.subr.mxu0 0.0
        %1081 = vmatpush1.msra.mxu0 0.0
        %1082 = vmatprep.subr.mxu0 0.0
        %1083 = vmatpush1.msra.mxu0 0.0
        %1084 = vmatprep.subr.mxu0 0.0
        %1085 = vmatpush1.msra.mxu0 0.0
        %1086 = vmatprep.subr.mxu0 0.0
        %1087 = vmatpush1.msra.mxu0 0.0
        %1088 = vmatprep.subr.mxu0 0.0
        %1089 = vmatpush1.msra.mxu0 0.0
        %1090 = vmatprep.subr.mxu0 0.0
        %1091 = vmatpush1.msra.mxu0 0.0
        %1092 = vmatprep.subr.mxu0 0.0
        %1093 = vmatpush1.msra.mxu0 0.0
        %1094 = vmatprep.subr.mxu0 0.0
        %1095 = vmatpush1.msra.mxu0 0.0
        %1096 = vmatprep.subr.mxu0 0.0
        %1097 = vmatpush1.msra.mxu0 0.0
        %1098 = vmatprep.subr.mxu0 0.0
        %1099 = vmatpush1.msra.mxu0 0.0
        %1100 = vmatprep.subr.mxu0 0.0
        %1101 = vmatpush1.msra.mxu0 0.0
        %1102 = vmatprep.subr.mxu0 0.0
        %1103 = vmatpush1.msra.mxu0 0.0
        %1104 = vmatprep.subr.mxu0 0.0
        %1105 = vmatpush1.msra.mxu0 0.0
        %1106 = vmatprep.subr.mxu0 0.0
        %1107 = vmatpush1.msra.mxu0 0.0
        %1108 = vmatprep.subr.mxu0 0.0
        %1109 = vmatpush1.msra.mxu0 0.0
        %1110 = vmatprep.subr.mxu0 0.0
        %1111 = vmatpush1.msra.mxu0 0.0
        %1112 = vmatprep.mubr.f32.mxu0 0.0
        %1113 = vmatmul.mubr.f32.gmra.mrb[0].mxu0 %v1044
        %v1114 = vpop.f32.mrb[0].mxu0
        %v1115 = vadd.f32 0.0, %v1114
        %v1116 = vpop.f32.mrb[0].mxu0
        %1117 = vmatprep.mubr.f32.mxu0 0.0
        %1118 = vmatmul.mubr.f32.gmra.mrb[0].mxu0 %v1046
        %v1119 = vpop.f32.mrb[0].mxu0
        %v1120 = vadd.f32 0.0, %v1119
        %v1121 = vpop.f32.mrb[0].mxu0
        %1122 = vdwg.mxu0
        %v1123 = vld [vmem:[%s8] sm:$0x1]
        %v1125 = vlaneseq
        %v1126 = vshrl.u32 %v1125, 7
        %v1127 = vsub.s32 0, %v1126
        %v1128 = vrot.slane %v1123, %v1127
        %v1130 = vmul.f32 %v862, %v1128
        %v1131 = vmul.f32 %v867, %v1128
        %v1132 = vmul.f32 %v1130, 1.442695
        %v1133 = vpow.pop %v1132
        %v1134 = vmul.f32 %v1131, 1.442695
        %v1135 = vpow.pop %v1134
        %v1136 = vsel %vm550, 1, 0
        %v1137 = vsel %vm551, 1, 0
        %vm1138 = vcmp.eq.s32.totalorder %v1136, 1
        %vm1139 = vcmp.eq.s32.totalorder %v1137, 1
        %v1140 = vsel %vm1138, 0.0, %v1133
        %v1141 = vsel %vm1139, 0.0, %v1135
        %v1142 = vmul.f32 %v945, %v1032
        %v1143 = vmul.f32 %v950, %v1037
        %1144 = vst [vmem:[#allocation3] sm:$0xff] %v1140
        %1145 = vst [vmem:[#allocation3 + $0x8] sm:$0xff] %v1141
        %1146 = vst [vmem:[#allocation4] sm:$0xff] %v1142
        %1147 = vst [vmem:[#allocation4 + $0x8] sm:$0xff] %v1143
        loop: start=0, step=1, limit=2
        $region89: #{tpu_custom_call.1} parent=79 // loop_pre_header
          _
        $region90: #{tpu_custom_call.1} parent=79 // loop_header
          %s1149 = sphi 0, %s1153
          %p1150 = scmp.ge.s32.totalorder %s1149, 2
          %v1154 = vphi 0.0, %v1195
        $region91: #{tpu_custom_call.1} parent=79 // loop_header_branch
          %1152 = sbr.rel (%p1150) target = $region95
        $region92: #{tpu_custom_call.1} parent=79 // loop_body
          %s1155 = smul.u32 %s1149, 8
          %s1156 = scalar_lea.vmem [#allocation3], %s1155
          %v1157 = vld [vmem:[%s1156] sm:$0xff]
          %s1158 = scalar_lea.vmem [#allocation4], %s1155
          %v1159 = vld [vmem:[%s1158] sm:$0xff]
          %vm1160 = vcmp.lt.s32.totalorder %v524, 1
          %v1161 = vrot.slane %v1157, 7
          %v1162 = vsel %vm1160, 1, 0
          %vm1163 = vcmp.eq.s32.totalorder %v1162, 1
          %v1164 = vsel %vm1163, 1.0, %v1161
          %v1165 = vrot.slane %v1159, 7
          %v1166 = vsel %vm1163, 0.0, %v1165
          %v1167 = vmul.f32 %v1157, %v1166
          %v1168 = vadd.f32 %v1167, %v1159
          %v1169 = vmul.f32 %v1157, %v1164
          %vm1170 = vcmp.lt.s32.totalorder %v524, 2
          %v1171 = vrot.slane %v1169, 6
          %v1172 = vsel %vm1170, 1, 0
          %vm1173 = vcmp.eq.s32.totalorder %v1172, 1
          %v1174 = vsel %vm1173, 1.0, %v1171
          %v1175 = vrot.slane %v1168, 6
          %v1176 = vsel %vm1173, 0.0, %v1175
          %v1177 = vmul.f32 %v1169, %v1176
          %v1178 = vadd.f32 %v1177, %v1168
          %v1179 = vmul.f32 %v1169, %v1174
          %vm1180 = vcmp.lt.s32.totalorder %v524, 4
          %v1181 = vrot.slane %v1179, 4
          %v1182 = vsel %vm1180, 1, 0
          %vm1183 = vcmp.eq.s32.totalorder %v1182, 1
          %v1184 = vsel %vm1183, 1.0, %v1181
          %v1185 = vrot.slane %v1178, 4
          %v1186 = vsel %vm1183, 0.0, %v1185
          %v1187 = vmul.f32 %v1179, %v1186
          %v1188 = vadd.f32 %v1187, %v1178
          %v1189 = vmul.f32 %v1179, %v1184
          %v1190 = vlaneseq
          %v1191 = vshrl.u32 %v1190, 7
          %v1192 = vsub.s32 7, %v1191
          %v1193 = vrot.slane %v1154, %v1192
          %v1194 = vmul.f32 %v1189, %v1193
          %v1195 = vadd.f32 %v1194, %v1188
          %s1196 = scalar_lea.vmem [#allocation5], %s1155
          %1197 = vst [vmem:[%s1196] sm:$0xff] %v1195
        $region93: #{tpu_custom_call.1} parent=79 // loop_footer
          %s1153 = sadd.s32 1, %s1149
        $region94: #{tpu_custom_call.1} parent=79 // loop_footer_branch
          %1148 = sbr.rel target = $region90
        $region95: #{tpu_custom_call.1} parent=79 // loop_exit
          _
        %v1198 = vld [vmem:[#allocation5] sm:$0xff]
        %v1199 = vld [vmem:[#allocation5 + $0x8] sm:$0xff]
        %v1200 = vmul.f32 %v1198, %v1115
        %v1201 = vmul.f32 %v1199, %v1120
        %v1202 = vpack.c.bf16 %v1201, %v1200
        %v1203 = vld [vmem:[%s14] sm:$0xf]
        %v1204 = vld [vmem:[%s14 + $0x4] sm:$0xf]
        %v1205 = vld [vmem:[%s14 + $0x8] sm:$0xf]
        %v1206 = vld [vmem:[%s14 + $0xc] sm:$0xf]
        %v1207 = vld [vmem:[%s14 + $0x10] sm:$0xf]
        %v1208 = vld [vmem:[%s14 + $0x14] sm:$0xf]
        %v1209 = vld [vmem:[%s14 + $0x18] sm:$0xf]
        %v1210 = vld [vmem:[%s14 + $0x1c] sm:$0xf]
        %v1211 = vld [vmem:[%s14 + $0x20] sm:$0xf]
        %v1212 = vld [vmem:[%s14 + $0x24] sm:$0xf]
        %v1213 = vld [vmem:[%s14 + $0x28] sm:$0xf]
        %v1214 = vld [vmem:[%s14 + $0x2c] sm:$0xf]
        %v1215 = vld [vmem:[%s14 + $0x30] sm:$0xf]
        %v1216 = vld [vmem:[%s14 + $0x34] sm:$0xf]
        %v1217 = vld [vmem:[%s14 + $0x38] sm:$0xf]
        %v1218 = vld [vmem:[%s14 + $0x3c] sm:$0xf]
        %v1219 = vld [vmem:[%s9] sm:$0x1]
        %v1221 = vlaneseq
        %v1222 = vshrl.u32 %v1221, 7
        %v1223 = vsub.s32 0, %v1222
        %v1224 = vrot.slane %v1219, %v1223
        %v1226 = vmul.f32 %v1224, %v695
        %v1227 = vmul.f32 %v1224, %v696
        %v1244 = vunpack.c.l.b16 %v1203
        %v1245 = vunpack.c.l.b16 %v1204
        %v1246 = vunpack.c.l.b16 %v1205
        %v1247 = vunpack.c.l.b16 %v1206
        %v1248 = vunpack.c.l.b16 %v1207
        %v1249 = vunpack.c.l.b16 %v1208
        %v1250 = vunpack.c.l.b16 %v1209
        %v1251 = vunpack.c.l.b16 %v1210
        %v1252 = vunpack.c.l.b16 %v1211
        %v1253 = vunpack.c.l.b16 %v1212
        %v1254 = vunpack.c.l.b16 %v1213
        %v1255 = vunpack.c.l.b16 %v1214
        %v1256 = vunpack.c.l.b16 %v1215
        %v1257 = vunpack.c.l.b16 %v1216
        %v1258 = vunpack.c.l.b16 %v1217
        %v1259 = vunpack.c.l.b16 %v1218
        %v1260 = vpack.c.b16 %v1245, %v1244
        %v1261 = vpack.c.b16 %v1247, %v1246
        %v1262 = vpack.c.b16 %v1249, %v1248
        %v1263 = vpack.c.b16 %v1251, %v1250
        %v1264 = vpack.c.b16 %v1253, %v1252
        %v1265 = vpack.c.b16 %v1255, %v1254
        %v1266 = vpack.c.b16 %v1257, %v1256
        %v1267 = vpack.c.b16 %v1259, %v1258
        %1276 = vmatprep.subr.bf16.mxu0 0
        %1277 = vmatpush1.bf16.msra.mxu0 %v1260
        %1278 = vmatprep.subr.bf16.mxu0 0
        %1279 = vmatpush1.bf16.msra.mxu0 %v1261
        %1280 = vmatprep.subr.bf16.mxu0 0
        %1281 = vmatpush1.bf16.msra.mxu0 %v1262
        %1282 = vmatprep.subr.bf16.mxu0 0
        %1283 = vmatpush1.bf16.msra.mxu0 %v1263
        %1284 = vmatprep.subr.bf16.mxu0 0
        %1285 = vmatpush1.bf16.msra.mxu0 %v1264
        %1286 = vmatprep.subr.bf16.mxu0 0
        %1287 = vmatpush1.bf16.msra.mxu0 %v1265
        %1288 = vmatprep.subr.bf16.mxu0 0
        %1289 = vmatpush1.bf16.msra.mxu0 %v1266
        %1290 = vmatprep.subr.bf16.mxu0 0
        %1291 = vmatpush1.bf16.msra.mxu0 %v1267
        %1292 = vmatprep.subr.bf16.mxu0 0
        %1293 = vmatpush1.bf16.msra.mxu0 0
        %1294 = vmatprep.subr.bf16.mxu0 0
        %1295 = vmatpush1.bf16.msra.mxu0 0
        %1296 = vmatprep.subr.bf16.mxu0 0
        %1297 = vmatpush1.bf16.msra.mxu0 0
        %1298 = vmatprep.subr.bf16.mxu0 0
        %1299 = vmatpush1.bf16.msra.mxu0 0
        %1300 = vmatprep.subr.bf16.mxu0 0
        %1301 = vmatpush1.bf16.msra.mxu0 0
        %1302 = vmatprep.subr.bf16.mxu0 0
        %1303 = vmatpush1.bf16.msra.mxu0 0
        %1304 = vmatprep.subr.bf16.mxu0 0
        %1305 = vmatpush1.bf16.msra.mxu0 0
        %1306 = vmatprep.subr.bf16.mxu0 0
        %1307 = vmatpush1.bf16.msra.mxu0 0
        %1308 = vmatprep.mubr.bf16.mxu0 0
        %1309 = vmatmul.mubr.bf16.gmra.mrb[0].mxu0 %v1202
        %v1310 = vpop.f32.mrb[0].mxu0
        %v1311 = vadd.f32 %v1226, %v1310
        %v1312 = vpop.f32.mrb[0].mxu0
        %v1313 = vpop.f32.mrb[0].mxu0
        %v1314 = vadd.f32 %v1227, %v1313
        %v1315 = vpop.f32.mrb[0].mxu0
        %1316 = vdwg.mxu0
        %v1317 = vld [vmem:[#allocation2] sm:$0xff]
        %v1318 = vld [vmem:[#allocation2 + $0x8] sm:$0xff]
        %v1319 = vld [vmem:[#allocation9] sm:$0x7]
        %v1320 = vld [vmem:[%s5] sm:$0x1]
        %v1323 = vrot.slane %v1317, 7
        %v1324 = vrot.slane %v1318, 7
        %v1325 = vsel %vm635, %v1323, %v1324
        %v1328 = vsel %vm635, 0.0, %v1323
        %v1329 = vsel %vm550, 0.0, %v1328
        %v1330 = vsel %vm551, 0.0, %v1325
        %v1331 = vrot.slane %v1317, 1
        %v1332 = vrot.slane %v1318, 1
        %v1333 = vsel %vm644, %v1331, %v1332
        %v1336 = vsel %vm644, %v1332, 0.0
        %v1337 = vsel %vm552, 0.0, %v1333
        %v1338 = vsel %vm553, 0.0, %v1336
        %v1339 = vlaneseq
        %v1340 = vshrl.u32 %v1339, 7
        %v1341 = vsub.s32 0, %v1340
        %v1342 = vrot.slane %v1319, %v1341
        %v1343 = vmul.f32 %v1329, %v1342
        %v1344 = vmul.f32 %v1330, %v1342
        %v1345 = vlaneseq
        %v1346 = vshrl.u32 %v1345, 7
        %v1347 = vsub.s32 1, %v1346
        %v1348 = vrot.slane %v1319, %v1347
        %v1349 = vmul.f32 %v1317, %v1348
        %v1350 = vmul.f32 %v1318, %v1348
        %v1351 = vadd.f32 %v1343, %v1349
        %v1352 = vadd.f32 %v1344, %v1350
        %v1353 = vlaneseq
        %v1354 = vshrl.u32 %v1353, 7
        %v1355 = vsub.s32 2, %v1354
        %v1356 = vrot.slane %v1319, %v1355
        %v1357 = vmul.f32 %v1337, %v1356
        %v1358 = vmul.f32 %v1338, %v1356
        %v1359 = vadd.f32 %v1351, %v1357
        %v1360 = vadd.f32 %v1352, %v1358
        %v1362 = vlaneseq
        %v1363 = vshrl.u32 %v1362, 7
        %v1364 = vsub.s32 0, %v1363
        %v1365 = vrot.slane %v1320, %v1364
        %v1367 = vadd.f32 %v1359, %v1365
        %v1368 = vadd.f32 %v1360, %v1365
        %v1369 = vxor.u32 %v1367, 2147483648
        %v1370 = vxor.u32 %v1368, 2147483648
        %v1371 = vmul.f32 %v1369, 1.442695
        %v1372 = vpow.pop %v1371
        %v1373 = vmul.f32 %v1370, 1.442695
        %v1374 = vpow.pop %v1373
        %v1375 = vadd.f32 %v1372, 1.0
        %v1376 = vadd.f32 %v1374, 1.0
        %v1377 = vrcp.pop %v1375
        %v1378 = vmul.f32 1.0, %v1377
        %v1379 = vrcp.pop %v1376
        %v1380 = vmul.f32 1.0, %v1379
        %v1381 = vmul.f32 %v1367, %v1378
        %v1382 = vmul.f32 %v1368, %v1380
        %v1383 = vpack.c.bf16 %v1314, %v1311
        %v1384 = vld [vmem:[%s10] sm:$0xf]
        %v1385 = vld [vmem:[%s10 + $0x4] sm:$0xf]
        %v1386 = vpack.c.bf16 %v1382, %v1381
        %v1387 = vld [vmem:[%s11] sm:$0xf]
        %v1388 = vld [vmem:[%s11 + $0x4] sm:$0xf]
        %v1391 = vunpack.c.l.b16 %v1387
        %v1392 = vunpack.c.l.b16 %v1388
        %v1393 = vpack.c.b16 %v1392, %v1391
        %v1396 = vsel %vm630, %v1386, 0
        %1398 = vmatprep.subr.bf16.mxu0 0
        %1399 = vmatpush1.bf16.msra.mxu0 %v1393
        %1400 = vmatprep.subr.bf16.mxu0 0
        %1401 = vmatpush1.bf16.msra.mxu0 0
        %1402 = vmatprep.subr.bf16.mxu0 0
        %1403 = vmatpush1.bf16.msra.mxu0 0
        %1404 = vmatprep.subr.bf16.mxu0 0
        %1405 = vmatpush1.bf16.msra.mxu0 0
        %1406 = vmatprep.subr.bf16.mxu0 0
        %1407 = vmatpush1.bf16.msra.mxu0 0
        %1408 = vmatprep.subr.bf16.mxu0 0
        %1409 = vmatpush1.bf16.msra.mxu0 0
        %1410 = vmatprep.subr.bf16.mxu0 0
        %1411 = vmatpush1.bf16.msra.mxu0 0
        %1412 = vmatprep.subr.bf16.mxu0 0
        %1413 = vmatpush1.bf16.msra.mxu0 0
        %1414 = vmatprep.subr.bf16.mxu0 0
        %1415 = vmatpush1.bf16.msra.mxu0 0
        %1416 = vmatprep.subr.bf16.mxu0 0
        %1417 = vmatpush1.bf16.msra.mxu0 0
        %1418 = vmatprep.subr.bf16.mxu0 0
        %1419 = vmatpush1.bf16.msra.mxu0 0
        %1420 = vmatprep.subr.bf16.mxu0 0
        %1421 = vmatpush1.bf16.msra.mxu0 0
        %1422 = vmatprep.subr.bf16.mxu0 0
        %1423 = vmatpush1.bf16.msra.mxu0 0
        %1424 = vmatprep.subr.bf16.mxu0 0
        %1425 = vmatpush1.bf16.msra.mxu0 0
        %1426 = vmatprep.subr.bf16.mxu0 0
        %1427 = vmatpush1.bf16.msra.mxu0 0
        %1428 = vmatprep.subr.bf16.mxu0 0
        %1429 = vmatpush1.bf16.msra.mxu0 0
        %1430 = vmatprep.mubr.bf16.mxu0 0
        %1431 = vmatmul.mubr.bf16.gmra.mrb[0].mxu0 %v1396
        %v1432 = vpop.f32.mrb[0].mxu0
        %v1433 = vadd.f32 0.0, %v1432
        %v1434 = vpop.f32.mrb[0].mxu0
        %v1435 = vpop.f32.mrb[0].mxu0
        %v1436 = vadd.f32 0.0, %v1435
        %v1437 = vpop.f32.mrb[0].mxu0
        %1438 = vdwg.mxu0
        %v1441 = vunpack.c.l.b16 %v1384
        %v1442 = vunpack.c.l.b16 %v1385
        %v1443 = vpack.c.b16 %v1442, %v1441
        %v1446 = vsel %vm630, %v1383, 0
        %1448 = vmatprep.subr.bf16.mxu0 0
        %1449 = vmatpush1.bf16.msra.mxu0 %v1443
        %1450 = vmatprep.subr.bf16.mxu0 0
        %1451 = vmatpush1.bf16.msra.mxu0 0
        %1452 = vmatprep.subr.bf16.mxu0 0
        %1453 = vmatpush1.bf16.msra.mxu0 0
        %1454 = vmatprep.subr.bf16.mxu0 0
        %1455 = vmatpush1.bf16.msra.mxu0 0
        %1456 = vmatprep.subr.bf16.mxu0 0
        %1457 = vmatpush1.bf16.msra.mxu0 0
        %1458 = vmatprep.subr.bf16.mxu0 0
        %1459 = vmatpush1.bf16.msra.mxu0 0
        %1460 = vmatprep.subr.bf16.mxu0 0
        %1461 = vmatpush1.bf16.msra.mxu0 0
        %1462 = vmatprep.subr.bf16.mxu0 0
        %1463 = vmatpush1.bf16.msra.mxu0 0
        %1464 = vmatprep.subr.bf16.mxu0 0
        %1465 = vmatpush1.bf16.msra.mxu0 0
        %1466 = vmatprep.subr.bf16.mxu0 0
        %1467 = vmatpush1.bf16.msra.mxu0 0
        %1468 = vmatprep.subr.bf16.mxu0 0
        %1469 = vmatpush1.bf16.msra.mxu0 0
        %1470 = vmatprep.subr.bf16.mxu0 0
        %1471 = vmatpush1.bf16.msra.mxu0 0
        %1472 = vmatprep.subr.bf16.mxu0 0
        %1473 = vmatpush1.bf16.msra.mxu0 0
        %1474 = vmatprep.subr.bf16.mxu0 0
        %1475 = vmatpush1.bf16.msra.mxu0 0
        %1476 = vmatprep.subr.bf16.mxu0 0
        %1477 = vmatpush1.bf16.msra.mxu0 0
        %1478 = vmatprep.subr.bf16.mxu0 0
        %1479 = vmatpush1.bf16.msra.mxu0 0
        %1480 = vmatprep.mubr.bf16.mxu0 0
        %1481 = vmatmul.mubr.bf16.gmra.mrb[0].mxu0 %v1446
        %v1482 = vpop.f32.mrb[0].mxu0
        %v1483 = vadd.f32 %v1433, %v1482
        %v1484 = vpop.f32.mrb[0].mxu0
        %v1485 = vpop.f32.mrb[0].mxu0
        %v1486 = vadd.f32 %v1436, %v1485
        %v1487 = vpop.f32.mrb[0].mxu0
        %1488 = vdwg.mxu0
        %1489 = vst [vmem:[%s514] sm:$0xff] %v1483
        %1490 = vst [vmem:[%s514 + $0x8] sm:$0xff] %v1486
        %s1491 = sand.u32 %s359, 1
        %s1492 = scalar_lea.sflag [#allocation8], %s1491
        %s1493 = sand.u32 %s359, 1
        %s1494 = smul.addr %s1493, 16
        %s1495 = scalar_lea.vmem [#allocation11], %s1494
        // Predicated region
        $region96: #{tpu_custom_call.1} parent=79 // pred_check
          %p1496 = pneg %p369
        $region97: #{tpu_custom_call.1} parent=79 // pred_check_branch
          %1498 = sbr.rel (%p1496) target = $region99
        $region98: #{tpu_custom_call.1} parent=79 // pred_region
          %s1499 = smul.u32 2, %s31
          %s1501 = ssub.s32 256, 256
          %1502 = vsyncadd %s1492, %s1501
          %s1503 = smul.addr %s1499, 128
          %s1504 = scalar_lea.hbm %s15, %s1503
          %s1505 = sshll.u32 %s1495, 4
          %s1506 = int_to_ptr.vmem [resolvable:$true] %s1505
          %1511 = dma.vmem_to_hbm [thread:$0]  %s1506, 256, %s1504, %s1492, 128, 128, 8
        $region99: #{tpu_custom_call.1} parent=79 // pred_fallthru
          _
      $region80: #{tpu_custom_call.1} parent=5 // pred_fallthru
        _
      %p1512 = scmp.le.s32.totalorder 2, %s26
      // Predicated region
      $region100: #{tpu_custom_call.1} parent=5 // pred_check
        %p1513 = pneg %p1512
      $region101: #{tpu_custom_call.1} parent=5 // pred_check_branch
        %1515 = sbr.rel (%p1513) target = $region103
      $region102: #{tpu_custom_call.1} parent=5 // pred_region
        %s1516 = ssub.s32 %s26, 2
        // Predicated region
        $region104: #{tpu_custom_call.1} parent=102 // pred_check
          %p1517 = pneg %p375
        $region105: #{tpu_custom_call.1} parent=102 // pred_check_branch
          %1519 = sbr.rel (%p1517) target = $region107
        $region106: #{tpu_custom_call.1} parent=102 // pred_region
          %s1520 = sand.u32 %s360, 1
          %s1521 = scalar_lea.sflag [#allocation8], %s1520
          %s1522 = sand.u32 %s360, 1
          %s1523 = smul.addr %s1522, 16
          %s1524 = scalar_lea.vmem [#allocation11], %s1523
          %1525 = dma.done %s1521, 256
        $region107: #{tpu_custom_call.1} parent=102 // pred_fallthru
          _
      $region103: #{tpu_custom_call.1} parent=5 // pred_fallthru
        _
    $region6: #{tpu_custom_call.1} parent=1 // loop_footer
      %s30 = sadd.s32 1, %s26
    $region7: #{tpu_custom_call.1} parent=1 // loop_footer_branch
      %25 = sbr.rel target = $region3
    $region8: #{tpu_custom_call.1} parent=1 // loop_exit
      _
    %1526 = vsyncpa [#allocation7], 1
    %s1527 = scalar_lea.sflag [#allocation7], 1
    %1528 = vsyncpa %s1527, 1
    %1529 = vsyncpa [#allocation10], 1
    %1530 = vsyncpa [#allocation8], 1
    %s1531 = scalar_lea.sflag [#allocation8], 1
    %1532 = vsyncpa %s1531, 1

</llo_original>
